<compile_context>
chip_gen: v6e
topology: v6e:2x2x1
jax: 0.10.0
libtpu: 0.0.40
codegen_flags: <defaults>
</compile_context>

<pallas_src>
import jax
import jax.numpy as jnp
from jax.experimental import pallas as pl
from jax.experimental.pallas import tpu as pltpu


def _critic_kernel(s_ref, a_ref, w1s_ref, w1a_ref, w2s_ref, small_ref, o_ref):
    wdt = w1s_ref.dtype                      # f32 or bf16 (weight storage dtype)
    HP = w2s_ref.shape[1]                    # 512 (lane-aligned per-head hidden 1)
    H2 = w2s_ref.shape[2]                    # 300 (per-head hidden 2)

    # ---- Fused layer 1 for BOTH heads: (B, 1024) = [h | g], lane-aligned ----
    hg = (jnp.dot(s_ref[...].astype(wdt), w1s_ref[...],
                  preferred_element_type=jnp.float32)
          + jnp.dot(a_ref[...].astype(wdt), w1a_ref[...],
                    preferred_element_type=jnp.float32)
          + small_ref[0:1, :])               # row 0 = [b1 pad | b4 pad]
    hg = jnp.maximum(hg, 0.0)
    h = hg[:, :HP]                           # Q1 head activations (lane offset 0)
    g = hg[:, HP:]                           # Q2 head activations (lane offset 512)

    # ---- Layer 2, per head (stacked, zero-padded input rows; biases on own rows)
    h2 = jnp.maximum(
        jnp.dot(h.astype(wdt), w2s_ref[0], preferred_element_type=jnp.float32)
        + small_ref[1:2, 0:H2], 0.0)         # row 1 = b2
    g2 = jnp.maximum(
        jnp.dot(g.astype(wdt), w2s_ref[1], preferred_element_type=jnp.float32)
        + small_ref[2:3, 0:H2], 0.0)         # row 2 = b5

    # ---- Layer 3 on VPU + XLU (row-vector dot, no padded N=2 MXU matmul) ----
    q1 = (jnp.sum(h2 * small_ref[3:4, 0:H2], axis=-1, keepdims=True)   # row 3 = w3
          + small_ref[5:6, 0:1])                                       # b3
    q2 = (jnp.sum(g2 * small_ref[4:5, 0:H2], axis=-1, keepdims=True)   # row 4 = w6
          + small_ref[5:6, 1:2])                                       # b6
    o_ref[...] = jnp.concatenate([q1, q2], axis=-1).astype(o_ref.dtype)


def critic_forward(state, action, packed):
    """Pallas implementation of Critic.forward. Returns (Q1, Q2), each (B, 1)."""
    B = state.shape[0]
    args = (state, action,
            packed["w1s"], packed["w1a"], packed["w2s"], packed["small"])
    vmem = pl.BlockSpec(memory_space=pltpu.MemorySpace.VMEM)

    SA = state.shape[1] + action.shape[1]
    HP = packed["w2s"].shape[1]
    H2 = packed["w2s"].shape[2]
    flops = 2 * B * (SA * 2 * HP + 2 * HP * H2 + 2 * H2)
    bytes_accessed = sum(int(a.size) * a.dtype.itemsize for a in args) + B * 2 * 4

    q = pl.pallas_call(
        _critic_kernel,
        out_shape=jax.ShapeDtypeStruct((B, 2), jnp.float32),
        in_specs=[vmem] * len(args),
        out_specs=vmem,
        cost_estimate=pl.CostEstimate(
            flops=flops, transcendentals=0, bytes_accessed=bytes_accessed),
    )(*args)
    return q[:, 0:1], q[:, 1:2]              # split the fused output in the wrapper


def init_critic_params(key, state_dim, action_dim):
    """Deterministic init matching the PyTorch Linear shapes.

    PyTorch nn.Linear(in, out) has weight (out, in); we store the transpose
    (in, out) and a (1, out) bias, so y = x @ W + b.
    """
    dims = [
        ("w1", "b1", state_dim + action_dim, 400),
        ("w2", "b2", 400, 300),
        ("w3", "b3", 300, 1),
        ("w4", "b4", state_dim + action_dim, 400),
        ("w5", "b5", 400, 300),
        ("w6", "b6", 300, 1),
    ]
    params = {}
    for wname, bname, fan_in, fan_out in dims:
        key, kw, kb = jax.random.split(key, 3)
        bound = 1.0 / jnp.sqrt(jnp.float32(fan_in))
        params[wname] = jax.random.uniform(
            kw, (fan_in, fan_out), jnp.float32, minval=-bound, maxval=bound)
        params[bname] = jax.random.uniform(
            kb, (1, fan_out), jnp.float32, minval=-bound, maxval=bound)
    return params


def pack_critic_params(params, state_dim, weights_dtype=jnp.bfloat16):
    """Build the fused/packed kernel operands ONCE (outside the hot path).

    bf16 weight storage is the default (largest relative DMA win on v5e);
    pass jnp.float32 for bit-exact matching of the f32 reference.
    """
    S = state_dim
    H1 = params["w2"].shape[0]               # 400
    H2 = params["w2"].shape[1]               # 300
    HP = 512                                  # lane-aligned per-head hidden-1 width

    def pad_cols(w, width):
        return jnp.pad(w, ((0, 0), (0, width - w.shape[1])))

    def pad_rows(w, height):
        return jnp.pad(w, ((0, height - w.shape[0]), (0, 0)))

    # Fused & padded layer-1 weights: (S+A, 1024) = [w1|0 , w4|0]
    w1f = jnp.concatenate([pad_cols(params["w1"], HP),
                           pad_cols(params["w4"], HP)], axis=1)
    w1s = w1f[:S].astype(weights_dtype)       # (S, 1024)
    w1a = w1f[S:].astype(weights_dtype)       # (A, 1024)

    # Stacked layer-2 weights with zero-padded input rows: (2, 512, 300)
    w2s = jnp.stack([pad_rows(params["w2"], HP),
                     pad_rows(params["w5"], HP)]).astype(weights_dtype)

    # Single small f32 array: biases + layer-3 rows, each starting at lane 0.
    W = 2 * HP                                 # 1024
    small = jnp.zeros((8, W), jnp.float32)
    small = small.at[0, 0:H1].set(params["b1"][0])         # [b1 | pad | b4 | pad]
    small = small.at[0, HP:HP + H1].set(params["b4"][0])
    small = small.at[1, 0:H2].set(params["b2"][0])         # b2 (row-aligned)
    small = small.at[2, 0:H2].set(params["b5"][0])         # b5 (row-aligned)
    small = small.at[3, 0:H2].set(params["w3"][:, 0])      # w3 as a row
    small = small.at[4, 0:H2].set(params["w6"][:, 0])      # w6 as a row
    small = small.at[5, 0].set(params["b3"][0, 0])         # b3
    small = small.at[5, 1].set(params["b6"][0, 0])         # b6

    return {"w1s": w1s, "w1a": w1a, "w2s": w2s, "small": small}


def critic_forward_ref(state, action, params):
    """Pure-JAX f32 reference for correctness checking."""
    x = jnp.concatenate([state, action], axis=1)
    h = jax.nn.relu(x @ params["w1"] + params["b1"])
    h = jax.nn.relu(h @ params["w2"] + params["b2"])
    q1 = h @ params["w3"] + params["b3"]
    g = jax.nn.relu(x @ params["w4"] + params["b4"])
    g = jax.nn.relu(g @ params["w5"] + params["b5"])
    q2 = g @ params["w6"] + params["b6"]
    return q1, q2


if __name__ == "__main__":
    state_dim, action_dim, batch = 17, 6, 8   # small MuJoCo-like shapes
    # TODO(synk): at production call sites, fold BCQ's sampled/perturbed
    # candidate actions into the batch so M >= 128 (v5e) / 256 (v6e, v7x).

    key = jax.random.PRNGKey(0)
    kp, ks, ka = jax.random.split(key, 3)
    params = init_critic_params(kp, state_dim, action_dim)
    state = jax.random.normal(ks, (batch, state_dim), jnp.float32)
    action = jax.random.normal(ka, (batch, action_dim), jnp.float32)

    q1_ref, q2_ref = critic_forward_ref(state, action, params)

    # --- f32-weight path: matches the reference ------------------------------
    packed_f32 = pack_critic_params(params, state_dim, jnp.float32)
    q1, q2 = critic_forward(state, action, packed_f32)
    q1 = jax.block_until_ready(q1)
    q2 = jax.block_until_ready(q2)
    assert q1.shape == (batch, 1) and q2.shape == (batch, 1)
    assert jnp.allclose(q1, q1_ref, atol=1e-4, rtol=1e-4)
    assert jnp.allclose(q2, q2_ref, atol=1e-4, rtol=1e-4)

    # --- bf16 weight-storage path (default production path) ------------------
    packed_bf16 = pack_critic_params(params, state_dim)    # default bf16
    q1b, q2b = critic_forward(state, action, packed_bf16)
    q1b = jax.block_until_ready(q1b)
    q2b = jax.block_until_ready(q2b)
    assert jnp.allclose(q1b, q1_ref, atol=3e-2, rtol=3e-2)
    assert jnp.allclose(q2b, q2_ref, atol=3e-2, rtol=3e-2)

    print("KERNEL_OK")
</pallas_src>

<mosaic_0001>
module attributes {stable_mosaic.version = 11 : i64} {
  func.func @_critic_kernel(%arg0: memref<8x17xf32, #tpu.memory_space<vmem>>, %arg1: memref<8x6xf32, #tpu.memory_space<vmem>>, %arg2: memref<17x1024xf32, #tpu.memory_space<vmem>>, %arg3: memref<6x1024xf32, #tpu.memory_space<vmem>>, %arg4: memref<2x512x300xf32, #tpu.memory_space<vmem>>, %arg5: memref<8x1024xf32, #tpu.memory_space<vmem>>, %arg6: memref<8x2xf32, #tpu.memory_space<vmem>>) attributes {dimension_semantics = [], scalar_prefetch = 0 : i64, scratch_operands = 0 : i64, tpu.core_type = #tpu.core_type<tc>} {
    %c0 = arith.constant 0 : index
    %c0_0 = arith.constant 0 : index
    %0 = vector.load %arg0[%c0, %c0_0] : memref<8x17xf32, #tpu.memory_space<vmem>>, vector<8x17xf32>
    %c0_1 = arith.constant 0 : index
    %c0_2 = arith.constant 0 : index
    %1 = vector.load %arg2[%c0_1, %c0_2] : memref<17x1024xf32, #tpu.memory_space<vmem>>, vector<17x1024xf32>
    %cst = arith.constant dense<0.000000e+00> : vector<8x1024xf32>
    %2 = tpu.matmul %0, %1, %cst {dimension_numbers = #tpu.dot_dimension_numbers<[1], [0], [0], [1], [0, 0, 1, 1], [], []>} : vector<8x17xf32>, vector<17x1024xf32>, vector<8x1024xf32> -> vector<8x1024xf32>
    %c0_3 = arith.constant 0 : index
    %c0_4 = arith.constant 0 : index
    %3 = vector.load %arg1[%c0_3, %c0_4] : memref<8x6xf32, #tpu.memory_space<vmem>>, vector<8x6xf32>
    %c0_5 = arith.constant 0 : index
    %c0_6 = arith.constant 0 : index
    %4 = vector.load %arg3[%c0_5, %c0_6] : memref<6x1024xf32, #tpu.memory_space<vmem>>, vector<6x1024xf32>
    %cst_7 = arith.constant dense<0.000000e+00> : vector<8x1024xf32>
    %5 = tpu.matmul %3, %4, %cst_7 {dimension_numbers = #tpu.dot_dimension_numbers<[1], [0], [0], [1], [0, 0, 1, 1], [], []>} : vector<8x6xf32>, vector<6x1024xf32>, vector<8x1024xf32> -> vector<8x1024xf32>
    %6 = arith.addf %2, %5 : vector<8x1024xf32>
    %c0_8 = arith.constant 0 : index
    %c0_9 = arith.constant 0 : index
    %7 = vector.load %arg5[%c0_8, %c0_9] : memref<8x1024xf32, #tpu.memory_space<vmem>>, vector<1x1024xf32>
    %8 = vector.broadcast %7 : vector<1x1024xf32> to vector<8x1024xf32>
    %9 = arith.addf %6, %8 : vector<8x1024xf32>
    %cst_10 = arith.constant 0.000000e+00 : f32
    %10 = vector.broadcast %cst_10 : f32 to vector<8x1024xf32>
    %11 = arith.maximumf %9, %10 : vector<8x1024xf32>
    %12 = vector.extract_strided_slice %11 {offsets = [0, 0], sizes = [8, 512], strides = [1, 1]} : vector<8x1024xf32> to vector<8x512xf32>
    %13 = vector.extract_strided_slice %11 {offsets = [0, 512], sizes = [8, 512], strides = [1, 1]} : vector<8x1024xf32> to vector<8x512xf32>
    %c0_11 = arith.constant 0 : index
    %c0_12 = arith.constant 0 : index
    %c0_13 = arith.constant 0 : index
    %14 = vector.load %arg4[%c0_11, %c0_12, %c0_13] : memref<2x512x300xf32, #tpu.memory_space<vmem>>, vector<1x512x300xf32>
    %15 = vector.shape_cast %14 : vector<1x512x300xf32> to vector<512x300xf32>
    %cst_14 = arith.constant dense<0.000000e+00> : vector<8x300xf32>
    %16 = tpu.matmul %12, %15, %cst_14 {dimension_numbers = #tpu.dot_dimension_numbers<[1], [0], [0], [1], [0, 0, 1, 1], [], []>} : vector<8x512xf32>, vector<512x300xf32>, vector<8x300xf32> -> vector<8x300xf32>
    %c1 = arith.constant 1 : index
    %c0_15 = arith.constant 0 : index
    %17 = vector.load %arg5[%c1, %c0_15] : memref<8x1024xf32, #tpu.memory_space<vmem>>, vector<1x300xf32>
    %18 = vector.broadcast %17 : vector<1x300xf32> to vector<8x300xf32>
    %19 = arith.addf %16, %18 : vector<8x300xf32>
    %cst_16 = arith.constant 0.000000e+00 : f32
    %20 = vector.broadcast %cst_16 : f32 to vector<8x300xf32>
    %21 = arith.maximumf %19, %20 : vector<8x300xf32>
    %c1_17 = arith.constant 1 : index
    %c0_18 = arith.constant 0 : index
    %c0_19 = arith.constant 0 : index
    %22 = vector.load %arg4[%c1_17, %c0_18, %c0_19] : memref<2x512x300xf32, #tpu.memory_space<vmem>>, vector<1x512x300xf32>
    %23 = vector.shape_cast %22 : vector<1x512x300xf32> to vector<512x300xf32>
    %cst_20 = arith.constant dense<0.000000e+00> : vector<8x300xf32>
    %24 = tpu.matmul %13, %23, %cst_20 {dimension_numbers = #tpu.dot_dimension_numbers<[1], [0], [0], [1], [0, 0, 1, 1], [], []>} : vector<8x512xf32>, vector<512x300xf32>, vector<8x300xf32> -> vector<8x300xf32>
    %c2 = arith.constant 2 : index
    %c0_21 = arith.constant 0 : index
    %25 = vector.load %arg5[%c2, %c0_21] : memref<8x1024xf32, #tpu.memory_space<vmem>>, vector<1x300xf32>
    %26 = vector.broadcast %25 : vector<1x300xf32> to vector<8x300xf32>
    %27 = arith.addf %24, %26 : vector<8x300xf32>
    %cst_22 = arith.constant 0.000000e+00 : f32
    %28 = vector.broadcast %cst_22 : f32 to vector<8x300xf32>
    %29 = arith.maximumf %27, %28 : vector<8x300xf32>
    %c3 = arith.constant 3 : index
    %c0_23 = arith.constant 0 : index
    %30 = vector.load %arg5[%c3, %c0_23] : memref<8x1024xf32, #tpu.memory_space<vmem>>, vector<1x300xf32>
    %31 = vector.broadcast %30 : vector<1x300xf32> to vector<8x300xf32>
    %32 = arith.mulf %21, %31 : vector<8x300xf32>
    %cst_24 = arith.constant dense<0.000000e+00> : vector<8xf32>
    %33 = vector.multi_reduction <add>, %32, %cst_24 [1] : vector<8x300xf32> to vector<8xf32>
    %34 = vector.shape_cast %33 : vector<8xf32> to vector<8x1xf32>
    %c5 = arith.constant 5 : index
    %c0_25 = arith.constant 0 : index
    %35 = vector.load %arg5[%c5, %c0_25] : memref<8x1024xf32, #tpu.memory_space<vmem>>, vector<1x1xf32>
    %36 = vector.broadcast %35 : vector<1x1xf32> to vector<8x1xf32>
    %37 = arith.addf %34, %36 : vector<8x1xf32>
    %c4 = arith.constant 4 : index
    %c0_26 = arith.constant 0 : index
    %38 = vector.load %arg5[%c4, %c0_26] : memref<8x1024xf32, #tpu.memory_space<vmem>>, vector<1x300xf32>
    %39 = vector.broadcast %38 : vector<1x300xf32> to vector<8x300xf32>
    %40 = arith.mulf %29, %39 : vector<8x300xf32>
    %cst_27 = arith.constant dense<0.000000e+00> : vector<8xf32>
    %41 = vector.multi_reduction <add>, %40, %cst_27 [1] : vector<8x300xf32> to vector<8xf32>
    %42 = vector.shape_cast %41 : vector<8xf32> to vector<8x1xf32>
    %c5_28 = arith.constant 5 : index
    %c1_29 = arith.constant 1 : index
    %43 = vector.load %arg5[%c5_28, %c1_29] : memref<8x1024xf32, #tpu.memory_space<vmem>>, vector<1x1xf32>
    %44 = vector.broadcast %43 : vector<1x1xf32> to vector<8x1xf32>
    %45 = arith.addf %42, %44 : vector<8x1xf32>
    %46 = tpu.concatenate %37, %45 in 1 : vector<8x1xf32>, vector<8x1xf32> -> vector<8x2xf32>
    %c0_30 = arith.constant 0 : index
    %c0_31 = arith.constant 0 : index
    %47 = vector.load %arg6[%c0_30, %c0_31] : memref<8x2xf32, #tpu.memory_space<vmem>>, vector<8x2xf32>
    tpu.vector_store %arg6[%c0_30, %c0_31], %46 {strides = array<i32>} : memref<8x2xf32, #tpu.memory_space<vmem>>, vector<8x2xf32>,
    return
  }
}

</mosaic_0001>

<llo_original>
// kernel: tpu_custom_call.1
$region0: #{tpu_custom_call.1}
  #allocation0 [shape = 'u32[]', space=smem, size = 0x4, offset = 0x4, fixed_abs, tag = 'smem constant byte address 0x4 - core index']
  #allocation1 [shape = 'u32[144,128]{1,0:T(1,128)}', space=vmem, size = 0x12000, scoped, tag = 'internal scratch']
  %s0 = inlined_call_operand.vmem [shape: f32[8,17], index: 0, kind: input, shape index: {}]
  %s1 = inlined_call_operand.vmem [shape: f32[8,6], index: 1, kind: input, shape index: {}]
  %s2 = inlined_call_operand.vmem [shape: f32[17,1024], index: 2, kind: input, shape index: {}]
  %s3 = inlined_call_operand.vmem [shape: f32[6,1024], index: 3, kind: input, shape index: {}]
  %s4 = inlined_call_operand.vmem [shape: f32[2,512,300], index: 4, kind: input, shape index: {}]
  %s5 = inlined_call_operand.vmem [shape: f32[8,1024], index: 5, kind: input, shape index: {}]
  %s6 = inlined_call_operand.vmem [shape: f32[8,2], index: 6, kind: output, shape index: {}]
  %s7 = sld [smem:[#allocation0]]
  $region34: #{tpu_custom_call.1} parent=0
    _
  %s9 = ssub.s32 1, %s7
  %s10 = scalar_select 0, %s9, %s7
  // Predicated region
  $region2: #{tpu_custom_call.1} parent=0 // pred_check
    _
  $region3: #{tpu_custom_call.1} parent=0 // pred_check_branch
    %12 = sbr.rel (0) target = $region5
  $region4: #{tpu_custom_call.1} parent=0 // pred_region
    _
  $region5: #{tpu_custom_call.1} parent=0 // pred_fallthru
    _
  // Predicated region
  $region6: #{tpu_custom_call.1} parent=0 // pred_check
    _
  $region7: #{tpu_custom_call.1} parent=0 // pred_check_branch
    %14 = sbr.rel (0) target = $region9
  $region8: #{tpu_custom_call.1} parent=0 // pred_region
    _
  $region9: #{tpu_custom_call.1} parent=0 // pred_fallthru
    _
  // Predicated region
  $region10: #{tpu_custom_call.1} parent=0 // pred_check
    _
  $region11: #{tpu_custom_call.1} parent=0 // pred_check_branch
    %16 = sbr.rel (0) target = $region13
  $region12: #{tpu_custom_call.1} parent=0 // pred_region
    _
  $region13: #{tpu_custom_call.1} parent=0 // pred_fallthru
    _
  // Predicated region
  $region14: #{tpu_custom_call.1} parent=0 // pred_check
    _
  $region15: #{tpu_custom_call.1} parent=0 // pred_check_branch
    %18 = sbr.rel (0) target = $region17
  $region16: #{tpu_custom_call.1} parent=0 // pred_region
    _
  $region17: #{tpu_custom_call.1} parent=0 // pred_fallthru
    _
  // Predicated region
  $region18: #{tpu_custom_call.1} parent=0 // pred_check
    _
  $region19: #{tpu_custom_call.1} parent=0 // pred_check_branch
    %20 = sbr.rel (0) target = $region21
  $region20: #{tpu_custom_call.1} parent=0 // pred_region
    _
  $region21: #{tpu_custom_call.1} parent=0 // pred_fallthru
    _
  // Predicated region
  $region22: #{tpu_custom_call.1} parent=0 // pred_check
    _
  $region23: #{tpu_custom_call.1} parent=0 // pred_check_branch
    %22 = sbr.rel (0) target = $region25
  $region24: #{tpu_custom_call.1} parent=0 // pred_region
    _
  $region25: #{tpu_custom_call.1} parent=0 // pred_fallthru
    _
  %v23 = vld [vmem:[%s0] sm:$0xff]
  %v24 = vld [vmem:[%s2] sm:$0xff]
  %v25 = vld [vmem:[%s2 + $0x8] sm:$0xff]
  %v26 = vld [vmem:[%s2 + $0x10] sm:$0xff]
  %v27 = vld [vmem:[%s2 + $0x18] sm:$0xff]
  %v28 = vld [vmem:[%s2 + $0x20] sm:$0xff]
  %v29 = vld [vmem:[%s2 + $0x28] sm:$0xff]
  %v30 = vld [vmem:[%s2 + $0x30] sm:$0xff]
  %v31 = vld [vmem:[%s2 + $0x38] sm:$0xff]
  %v32 = vld [vmem:[%s2 + $0x40] sm:$0xff]
  %v33 = vld [vmem:[%s2 + $0x48] sm:$0xff]
  %v34 = vld [vmem:[%s2 + $0x50] sm:$0xff]
  %v35 = vld [vmem:[%s2 + $0x58] sm:$0xff]
  %v36 = vld [vmem:[%s2 + $0x60] sm:$0xff]
  %v37 = vld [vmem:[%s2 + $0x68] sm:$0xff]
  %v38 = vld [vmem:[%s2 + $0x70] sm:$0xff]
  %v39 = vld [vmem:[%s2 + $0x78] sm:$0xff]
  %v40 = vld [vmem:[%s2 + $0x80] sm:$0x1]
  %v41 = vld [vmem:[%s2 + $0x88] sm:$0x1]
  %v42 = vld [vmem:[%s2 + $0x90] sm:$0x1]
  %v43 = vld [vmem:[%s2 + $0x98] sm:$0x1]
  %v44 = vld [vmem:[%s2 + $0xa0] sm:$0x1]
  %v45 = vld [vmem:[%s2 + $0xa8] sm:$0x1]
  %v46 = vld [vmem:[%s2 + $0xb0] sm:$0x1]
  %v47 = vld [vmem:[%s2 + $0xb8] sm:$0x1]
  %v48 = vld [vmem:[%s1] sm:$0xff]
  %v49 = vld [vmem:[%s3] sm:$0x3f]
  %v50 = vld [vmem:[%s3 + $0x8] sm:$0x3f]
  %v51 = vld [vmem:[%s3 + $0x10] sm:$0x3f]
  %v52 = vld [vmem:[%s3 + $0x18] sm:$0x3f]
  %v53 = vld [vmem:[%s3 + $0x20] sm:$0x3f]
  %v54 = vld [vmem:[%s3 + $0x28] sm:$0x3f]
  %v55 = vld [vmem:[%s3 + $0x30] sm:$0x3f]
  %v56 = vld [vmem:[%s3 + $0x38] sm:$0x3f]
  %vm57 = vcmask 48128
  %v59 = vsel %vm57, %v48, 0
  %vm61 = vcmask 1045504
  %v63 = vsel %vm61, %v49, 0
  %v66 = vsel %vm61, %v50, 0
  %v69 = vsel %vm61, %v51, 0
  %v72 = vsel %vm61, %v52, 0
  %v75 = vsel %vm61, %v53, 0
  %v78 = vsel %vm61, %v54, 0
  %v81 = vsel %vm61, %v55, 0
  %v84 = vsel %vm61, %v56, 0
  %86 = vmatprep.subr.mxu0 0.0
  %87 = vmatpush1.msra.mxu0 0.0
  %88 = vmatprep.subr.mxu0 0.0
  %89 = vmatpush1.msra.mxu0 0.0
  %90 = vmatprep.subr.mxu0 0.0
  %91 = vmatpush1.msra.mxu0 0.0
  %92 = vmatprep.subr.mxu0 0.0
  %93 = vmatpush1.msra.mxu0 0.0
  %94 = vmatprep.subr.mxu0 0.0
  %95 = vmatpush1.msra.mxu0 0.0
  %96 = vmatprep.subr.mxu0 0.0
  %97 = vmatpush1.msra.mxu0 0.0
  %98 = vmatprep.subr.mxu0 0.0
  %99 = vmatpush1.msra.mxu0 0.0
  %100 = vmatprep.subr.mxu0 0.0
  %101 = vmatpush1.msra.mxu0 0.0
  %102 = vmatprep.subr.mxu0 0.0
  %103 = vmatpush1.msra.mxu0 0.0
  %104 = vmatprep.subr.mxu0 0.0
  %105 = vmatpush1.msra.mxu0 0.0
  %106 = vmatprep.subr.mxu0 0.0
  %107 = vmatpush1.msra.mxu0 0.0
  %108 = vmatprep.subr.mxu0 0.0
  %109 = vmatpush1.msra.mxu0 0.0
  %110 = vmatprep.subr.mxu0 0.0
  %111 = vmatpush1.msra.mxu0 0.0
  %112 = vmatprep.subr.mxu0 0.0
  %113 = vmatpush1.msra.mxu0 0.0
  %114 = vmatprep.subr.mxu0 0.0
  %115 = vmatpush1.msra.mxu0 0.0
  %116 = vmatprep.subr.mxu0 %v66
  %117 = vmatpush1.msra.mxu0 %v63
  %118 = vmatprep.subr.mxu0 0.0
  %119 = vmatpush2.msra.mxu0 0.0
  %120 = vmatprep.subr.mxu0 0.0
  %121 = vmatpush2.msra.mxu0 0.0
  %122 = vmatprep.subr.mxu0 0.0
  %123 = vmatpush2.msra.mxu0 0.0
  %124 = vmatprep.subr.mxu0 0.0
  %125 = vmatpush2.msra.mxu0 0.0
  %126 = vmatprep.subr.mxu0 0.0
  %127 = vmatpush2.msra.mxu0 0.0
  %128 = vmatprep.subr.mxu0 0.0
  %129 = vmatpush2.msra.mxu0 0.0
  %130 = vmatprep.subr.mxu0 0.0
  %131 = vmatpush2.msra.mxu0 0.0
  %132 = vmatprep.subr.mxu0 0.0
  %133 = vmatpush2.msra.mxu0 0.0
  %134 = vmatprep.subr.mxu0 0.0
  %135 = vmatpush2.msra.mxu0 0.0
  %136 = vmatprep.subr.mxu0 0.0
  %137 = vmatpush2.msra.mxu0 0.0
  %138 = vmatprep.subr.mxu0 0.0
  %139 = vmatpush2.msra.mxu0 0.0
  %140 = vmatprep.subr.mxu0 0.0
  %141 = vmatpush2.msra.mxu0 0.0
  %142 = vmatprep.subr.mxu0 0.0
  %143 = vmatpush2.msra.mxu0 0.0
  %144 = vmatprep.subr.mxu0 0.0
  %145 = vmatpush2.msra.mxu0 0.0
  %146 = vmatprep.subr.mxu0 0.0
  %147 = vmatpush2.msra.mxu0 0.0
  %148 = vmatprep.subr.mxu0 0.0
  %149 = vmatpush2.msra.mxu0 0.0
  %150 = vmatprep.mubr.f32.mxu0 0.0
  %151 = vmatmul.mubr.f32.gmra.mxu0 %v59
  %v152 = vpop.f32.mrf.mxu0
  %v153 = vadd.f32 0.0, %v152
  %v154 = vpop.f32.mrf.mxu0
  %v155 = vadd.f32 0.0, %v154
  %156 = vdwg.mxu0
  %157 = vmatprep.subr.mxu0 0.0
  %158 = vmatpush1.msra.mxu0 0.0
  %159 = vmatprep.subr.mxu0 0.0
  %160 = vmatpush1.msra.mxu0 0.0
  %161 = vmatprep.subr.mxu0 0.0
  %162 = vmatpush1.msra.mxu0 0.0
  %163 = vmatprep.subr.mxu0 0.0
  %164 = vmatpush1.msra.mxu0 0.0
  %165 = vmatprep.subr.mxu0 0.0
  %166 = vmatpush1.msra.mxu0 0.0
  %167 = vmatprep.subr.mxu0 0.0
  %168 = vmatpush1.msra.mxu0 0.0
  %169 = vmatprep.subr.mxu0 0.0
  %170 = vmatpush1.msra.mxu0 0.0
  %171 = vmatprep.subr.mxu0 0.0
  %172 = vmatpush1.msra.mxu0 0.0
  %173 = vmatprep.subr.mxu0 0.0
  %174 = vmatpush1.msra.mxu0 0.0
  %175 = vmatprep.subr.mxu0 0.0
  %176 = vmatpush1.msra.mxu0 0.0
  %177 = vmatprep.subr.mxu0 0.0
  %178 = vmatpush1.msra.mxu0 0.0
  %179 = vmatprep.subr.mxu0 0.0
  %180 = vmatpush1.msra.mxu0 0.0
  %181 = vmatprep.subr.mxu0 0.0
  %182 = vmatpush1.msra.mxu0 0.0
  %183 = vmatprep.subr.mxu0 0.0
  %184 = vmatpush1.msra.mxu0 0.0
  %185 = vmatprep.subr.mxu0 0.0
  %186 = vmatpush1.msra.mxu0 0.0
  %187 = vmatprep.subr.mxu0 %v72
  %188 = vmatpush1.msra.mxu0 %v69
  %189 = vmatprep.subr.mxu0 0.0
  %190 = vmatpush2.msra.mxu0 0.0
  %191 = vmatprep.subr.mxu0 0.0
  %192 = vmatpush2.msra.mxu0 0.0
  %193 = vmatprep.subr.mxu0 0.0
  %194 = vmatpush2.msra.mxu0 0.0
  %195 = vmatprep.subr.mxu0 0.0
  %196 = vmatpush2.msra.mxu0 0.0
  %197 = vmatprep.subr.mxu0 0.0
  %198 = vmatpush2.msra.mxu0 0.0
  %199 = vmatprep.subr.mxu0 0.0
  %200 = vmatpush2.msra.mxu0 0.0
  %201 = vmatprep.subr.mxu0 0.0
  %202 = vmatpush2.msra.mxu0 0.0
  %203 = vmatprep.subr.mxu0 0.0
  %204 = vmatpush2.msra.mxu0 0.0
  %205 = vmatprep.subr.mxu0 0.0
  %206 = vmatpush2.msra.mxu0 0.0
  %207 = vmatprep.subr.mxu0 0.0
  %208 = vmatpush2.msra.mxu0 0.0
  %209 = vmatprep.subr.mxu0 0.0
  %210 = vmatpush2.msra.mxu0 0.0
  %211 = vmatprep.subr.mxu0 0.0
  %212 = vmatpush2.msra.mxu0 0.0
  %213 = vmatprep.subr.mxu0 0.0
  %214 = vmatpush2.msra.mxu0 0.0
  %215 = vmatprep.subr.mxu0 0.0
  %216 = vmatpush2.msra.mxu0 0.0
  %217 = vmatprep.subr.mxu0 0.0
  %218 = vmatpush2.msra.mxu0 0.0
  %219 = vmatprep.subr.mxu0 0.0
  %220 = vmatpush2.msra.mxu0 0.0
  %221 = vmatprep.mubr.f32.mxu0 0.0
  %222 = vmatmul.mubr.f32.gmra.mxu0 %v59
  %v223 = vpop.f32.mrf.mxu0
  %v224 = vadd.f32 0.0, %v223
  %v225 = vpop.f32.mrf.mxu0
  %v226 = vadd.f32 0.0, %v225
  %227 = vdwg.mxu0
  %228 = vmatprep.subr.mxu0 0.0
  %229 = vmatpush1.msra.mxu0 0.0
  %230 = vmatprep.subr.mxu0 0.0
  %231 = vmatpush1.msra.mxu0 0.0
  %232 = vmatprep.subr.mxu0 0.0
  %233 = vmatpush1.msra.mxu0 0.0
  %234 = vmatprep.subr.mxu0 0.0
  %235 = vmatpush1.msra.mxu0 0.0
  %236 = vmatprep.subr.mxu0 0.0
  %237 = vmatpush1.msra.mxu0 0.0
  %238 = vmatprep.subr.mxu0 0.0
  %239 = vmatpush1.msra.mxu0 0.0
  %240 = vmatprep.subr.mxu0 0.0
  %241 = vmatpush1.msra.mxu0 0.0
  %242 = vmatprep.subr.mxu0 0.0
  %243 = vmatpush1.msra.mxu0 0.0
  %244 = vmatprep.subr.mxu0 0.0
  %245 = vmatpush1.msra.mxu0 0.0
  %246 = vmatprep.subr.mxu0 0.0
  %247 = vmatpush1.msra.mxu0 0.0
  %248 = vmatprep.subr.mxu0 0.0
  %249 = vmatpush1.msra.mxu0 0.0
  %250 = vmatprep.subr.mxu0 0.0
  %251 = vmatpush1.msra.mxu0 0.0
  %252 = vmatprep.subr.mxu0 0.0
  %253 = vmatpush1.msra.mxu0 0.0
  %254 = vmatprep.subr.mxu0 0.0
  %255 = vmatpush1.msra.mxu0 0.0
  %256 = vmatprep.subr.mxu0 0.0
  %257 = vmatpush1.msra.mxu0 0.0
  %258 = vmatprep.subr.mxu0 %v78
  %259 = vmatpush1.msra.mxu0 %v75
  %260 = vmatprep.subr.mxu0 0.0
  %261 = vmatpush2.msra.mxu0 0.0
  %262 = vmatprep.subr.mxu0 0.0
  %263 = vmatpush2.msra.mxu0 0.0
  %264 = vmatprep.subr.mxu0 0.0
  %265 = vmatpush2.msra.mxu0 0.0
  %266 = vmatprep.subr.mxu0 0.0
  %267 = vmatpush2.msra.mxu0 0.0
  %268 = vmatprep.subr.mxu0 0.0
  %269 = vmatpush2.msra.mxu0 0.0
  %270 = vmatprep.subr.mxu0 0.0
  %271 = vmatpush2.msra.mxu0 0.0
  %272 = vmatprep.subr.mxu0 0.0
  %273 = vmatpush2.msra.mxu0 0.0
  %274 = vmatprep.subr.mxu0 0.0
  %275 = vmatpush2.msra.mxu0 0.0
  %276 = vmatprep.subr.mxu0 0.0
  %277 = vmatpush2.msra.mxu0 0.0
  %278 = vmatprep.subr.mxu0 0.0
  %279 = vmatpush2.msra.mxu0 0.0
  %280 = vmatprep.subr.mxu0 0.0
  %281 = vmatpush2.msra.mxu0 0.0
  %282 = vmatprep.subr.mxu0 0.0
  %283 = vmatpush2.msra.mxu0 0.0
  %284 = vmatprep.subr.mxu0 0.0
  %285 = vmatpush2.msra.mxu0 0.0
  %286 = vmatprep.subr.mxu0 0.0
  %287 = vmatpush2.msra.mxu0 0.0
  %288 = vmatprep.subr.mxu0 0.0
  %289 = vmatpush2.msra.mxu0 0.0
  %290 = vmatprep.subr.mxu0 0.0
  %291 = vmatpush2.msra.mxu0 0.0
  %292 = vmatprep.mubr.f32.mxu0 0.0
  %293 = vmatmul.mubr.f32.gmra.mxu0 %v59
  %v294 = vpop.f32.mrf.mxu0
  %v295 = vadd.f32 0.0, %v294
  %v296 = vpop.f32.mrf.mxu0
  %v297 = vadd.f32 0.0, %v296
  %298 = vdwg.mxu0
  %299 = vmatprep.subr.mxu0 0.0
  %300 = vmatpush1.msra.mxu0 0.0
  %301 = vmatprep.subr.mxu0 0.0
  %302 = vmatpush1.msra.mxu0 0.0
  %303 = vmatprep.subr.mxu0 0.0
  %304 = vmatpush1.msra.mxu0 0.0
  %305 = vmatprep.subr.mxu0 0.0
  %306 = vmatpush1.msra.mxu0 0.0
  %307 = vmatprep.subr.mxu0 0.0
  %308 = vmatpush1.msra.mxu0 0.0
  %309 = vmatprep.subr.mxu0 0.0
  %310 = vmatpush1.msra.mxu0 0.0
  %311 = vmatprep.subr.mxu0 0.0
  %312 = vmatpush1.msra.mxu0 0.0
  %313 = vmatprep.subr.mxu0 0.0
  %314 = vmatpush1.msra.mxu0 0.0
  %315 = vmatprep.subr.mxu0 0.0
  %316 = vmatpush1.msra.mxu0 0.0
  %317 = vmatprep.subr.mxu0 0.0
  %318 = vmatpush1.msra.mxu0 0.0
  %319 = vmatprep.subr.mxu0 0.0
  %320 = vmatpush1.msra.mxu0 0.0
  %321 = vmatprep.subr.mxu0 0.0
  %322 = vmatpush1.msra.mxu0 0.0
  %323 = vmatprep.subr.mxu0 0.0
  %324 = vmatpush1.msra.mxu0 0.0
  %325 = vmatprep.subr.mxu0 0.0
  %326 = vmatpush1.msra.mxu0 0.0
  %327 = vmatprep.subr.mxu0 0.0
  %328 = vmatpush1.msra.mxu0 0.0
  %329 = vmatprep.subr.mxu0 %v84
  %330 = vmatpush1.msra.mxu0 %v81
  %331 = vmatprep.subr.mxu0 0.0
  %332 = vmatpush2.msra.mxu0 0.0
  %333 = vmatprep.subr.mxu0 0.0
  %334 = vmatpush2.msra.mxu0 0.0
  %335 = vmatprep.subr.mxu0 0.0
  %336 = vmatpush2.msra.mxu0 0.0
  %337 = vmatprep.subr.mxu0 0.0
  %338 = vmatpush2.msra.mxu0 0.0
  %339 = vmatprep.subr.mxu0 0.0
  %340 = vmatpush2.msra.mxu0 0.0
  %341 = vmatprep.subr.mxu0 0.0
  %342 = vmatpush2.msra.mxu0 0.0
  %343 = vmatprep.subr.mxu0 0.0
  %344 = vmatpush2.msra.mxu0 0.0
  %345 = vmatprep.subr.mxu0 0.0
  %346 = vmatpush2.msra.mxu0 0.0
  %347 = vmatprep.subr.mxu0 0.0
  %348 = vmatpush2.msra.mxu0 0.0
  %349 = vmatprep.subr.mxu0 0.0
  %350 = vmatpush2.msra.mxu0 0.0
  %351 = vmatprep.subr.mxu0 0.0
  %352 = vmatpush2.msra.mxu0 0.0
  %353 = vmatprep.subr.mxu0 0.0
  %354 = vmatpush2.msra.mxu0 0.0
  %355 = vmatprep.subr.mxu0 0.0
  %356 = vmatpush2.msra.mxu0 0.0
  %357 = vmatprep.subr.mxu0 0.0
  %358 = vmatpush2.msra.mxu0 0.0
  %359 = vmatprep.subr.mxu0 0.0
  %360 = vmatpush2.msra.mxu0 0.0
  %361 = vmatprep.subr.mxu0 0.0
  %362 = vmatpush2.msra.mxu0 0.0
  %363 = vmatprep.mubr.f32.mxu0 0.0
  %364 = vmatmul.mubr.f32.gmra.mxu0 %v59
  %v365 = vpop.f32.mrf.mxu0
  %v366 = vadd.f32 0.0, %v365
  %v367 = vpop.f32.mrf.mxu0
  %v368 = vadd.f32 0.0, %v367
  %369 = vdwg.mxu0
  %vm370 = vcmask 138240
  %v372 = vsel %vm370, %v23, 0
  %vm374 = vcmask 1040384
  %v376 = vsel %vm374, %v40, 0
  %v379 = vsel %vm374, %v41, 0
  %v382 = vsel %vm374, %v42, 0
  %v385 = vsel %vm374, %v43, 0
  %v388 = vsel %vm374, %v44, 0
  %v391 = vsel %vm374, %v45, 0
  %v394 = vsel %vm374, %v46, 0
  %v397 = vsel %vm374, %v47, 0
  %399 = vmatprep.subr.mxu0 0.0
  %400 = vmatpush1.msra.mxu0 0.0
  %401 = vmatprep.subr.mxu0 0.0
  %402 = vmatpush1.msra.mxu0 0.0
  %403 = vmatprep.subr.mxu0 0.0
  %404 = vmatpush1.msra.mxu0 0.0
  %405 = vmatprep.subr.mxu0 0.0
  %406 = vmatpush1.msra.mxu0 0.0
  %407 = vmatprep.subr.mxu0 0.0
  %408 = vmatpush1.msra.mxu0 0.0
  %409 = vmatprep.subr.mxu0 0.0
  %410 = vmatpush1.msra.mxu0 0.0
  %411 = vmatprep.subr.mxu0 0.0
  %412 = vmatpush1.msra.mxu0 0.0
  %413 = vmatprep.subr.mxu0 0.0
  %414 = vmatpush1.msra.mxu0 0.0
  %415 = vmatprep.subr.mxu0 0.0
  %416 = vmatpush1.msra.mxu0 0.0
  %417 = vmatprep.subr.mxu0 0.0
  %418 = vmatpush1.msra.mxu0 0.0
  %419 = vmatprep.subr.mxu0 0.0
  %420 = vmatpush1.msra.mxu0 0.0
  %421 = vmatprep.subr.mxu0 0.0
  %422 = vmatpush1.msra.mxu0 0.0
  %423 = vmatprep.subr.mxu0 0.0
  %424 = vmatpush1.msra.mxu0 0.0
  %425 = vmatprep.subr.mxu0 %v379
  %426 = vmatpush1.msra.mxu0 %v376
  %427 = vmatprep.subr.mxu0 %v33
  %428 = vmatpush1.msra.mxu0 %v32
  %429 = vmatprep.subr.mxu0 %v25
  %430 = vmatpush1.msra.mxu0 %v24
  %431 = vmatprep.subr.mxu0 0.0
  %432 = vmatpush2.msra.mxu0 0.0
  %433 = vmatprep.subr.mxu0 0.0
  %434 = vmatpush2.msra.mxu0 0.0
  %435 = vmatprep.subr.mxu0 0.0
  %436 = vmatpush2.msra.mxu0 0.0
  %437 = vmatprep.subr.mxu0 0.0
  %438 = vmatpush2.msra.mxu0 0.0
  %439 = vmatprep.subr.mxu0 0.0
  %440 = vmatpush2.msra.mxu0 0.0
  %441 = vmatprep.subr.mxu0 0.0
  %442 = vmatpush2.msra.mxu0 0.0
  %443 = vmatprep.subr.mxu0 0.0
  %444 = vmatpush2.msra.mxu0 0.0
  %445 = vmatprep.subr.mxu0 0.0
  %446 = vmatpush2.msra.mxu0 0.0
  %447 = vmatprep.subr.mxu0 0.0
  %448 = vmatpush2.msra.mxu0 0.0
  %449 = vmatprep.subr.mxu0 0.0
  %450 = vmatpush2.msra.mxu0 0.0
  %451 = vmatprep.subr.mxu0 0.0
  %452 = vmatpush2.msra.mxu0 0.0
  %453 = vmatprep.subr.mxu0 0.0
  %454 = vmatpush2.msra.mxu0 0.0
  %455 = vmatprep.subr.mxu0 0.0
  %456 = vmatpush2.msra.mxu0 0.0
  %457 = vmatprep.subr.mxu0 0.0
  %458 = vmatpush2.msra.mxu0 0.0
  %459 = vmatprep.subr.mxu0 0.0
  %460 = vmatpush2.msra.mxu0 0.0
  %461 = vmatprep.subr.mxu0 0.0
  %462 = vmatpush2.msra.mxu0 0.0
  %463 = vmatprep.mubr.f32.mxu0 0.0
  %464 = vmatmul.mubr.f32.gmra.mxu0 %v372
  %v465 = vpop.f32.mrf.mxu0
  %v466 = vadd.f32 %v153, %v465
  %v467 = vpop.f32.mrf.mxu0
  %v468 = vadd.f32 %v155, %v467
  %469 = vdwg.mxu0
  %470 = vmatprep.subr.mxu0 0.0
  %471 = vmatpush1.msra.mxu0 0.0
  %472 = vmatprep.subr.mxu0 0.0
  %473 = vmatpush1.msra.mxu0 0.0
  %474 = vmatprep.subr.mxu0 0.0
  %475 = vmatpush1.msra.mxu0 0.0
  %476 = vmatprep.subr.mxu0 0.0
  %477 = vmatpush1.msra.mxu0 0.0
  %478 = vmatprep.subr.mxu0 0.0
  %479 = vmatpush1.msra.mxu0 0.0
  %480 = vmatprep.subr.mxu0 0.0
  %481 = vmatpush1.msra.mxu0 0.0
  %482 = vmatprep.subr.mxu0 0.0
  %483 = vmatpush1.msra.mxu0 0.0
  %484 = vmatprep.subr.mxu0 0.0
  %485 = vmatpush1.msra.mxu0 0.0
  %486 = vmatprep.subr.mxu0 0.0
  %487 = vmatpush1.msra.mxu0 0.0
  %488 = vmatprep.subr.mxu0 0.0
  %489 = vmatpush1.msra.mxu0 0.0
  %490 = vmatprep.subr.mxu0 0.0
  %491 = vmatpush1.msra.mxu0 0.0
  %492 = vmatprep.subr.mxu0 0.0
  %493 = vmatpush1.msra.mxu0 0.0
  %494 = vmatprep.subr.mxu0 0.0
  %495 = vmatpush1.msra.mxu0 0.0
  %496 = vmatprep.subr.mxu0 %v385
  %497 = vmatpush1.msra.mxu0 %v382
  %498 = vmatprep.subr.mxu0 %v35
  %499 = vmatpush1.msra.mxu0 %v34
  %500 = vmatprep.subr.mxu0 %v27
  %501 = vmatpush1.msra.mxu0 %v26
  %502 = vmatprep.subr.mxu0 0.0
  %503 = vmatpush2.msra.mxu0 0.0
  %504 = vmatprep.subr.mxu0 0.0
  %505 = vmatpush2.msra.mxu0 0.0
  %506 = vmatprep.subr.mxu0 0.0
  %507 = vmatpush2.msra.mxu0 0.0
  %508 = vmatprep.subr.mxu0 0.0
  %509 = vmatpush2.msra.mxu0 0.0
  %510 = vmatprep.subr.mxu0 0.0
  %511 = vmatpush2.msra.mxu0 0.0
  %512 = vmatprep.subr.mxu0 0.0
  %513 = vmatpush2.msra.mxu0 0.0
  %514 = vmatprep.subr.mxu0 0.0
  %515 = vmatpush2.msra.mxu0 0.0
  %516 = vmatprep.subr.mxu0 0.0
  %517 = vmatpush2.msra.mxu0 0.0
  %518 = vmatprep.subr.mxu0 0.0
  %519 = vmatpush2.msra.mxu0 0.0
  %520 = vmatprep.subr.mxu0 0.0
  %521 = vmatpush2.msra.mxu0 0.0
  %522 = vmatprep.subr.mxu0 0.0
  %523 = vmatpush2.msra.mxu0 0.0
  %524 = vmatprep.subr.mxu0 0.0
  %525 = vmatpush2.msra.mxu0 0.0
  %526 = vmatprep.subr.mxu0 0.0
  %527 = vmatpush2.msra.mxu0 0.0
  %528 = vmatprep.subr.mxu0 0.0
  %529 = vmatpush2.msra.mxu0 0.0
  %530 = vmatprep.subr.mxu0 0.0
  %531 = vmatpush2.msra.mxu0 0.0
  %532 = vmatprep.subr.mxu0 0.0
  %533 = vmatpush2.msra.mxu0 0.0
  %534 = vmatprep.mubr.f32.mxu0 0.0
  %535 = vmatmul.mubr.f32.gmra.mxu0 %v372
  %v536 = vpop.f32.mrf.mxu0
  %v537 = vadd.f32 %v224, %v536
  %v538 = vpop.f32.mrf.mxu0
  %v539 = vadd.f32 %v226, %v538
  %540 = vdwg.mxu0
  %541 = vmatprep.subr.mxu0 0.0
  %542 = vmatpush1.msra.mxu0 0.0
  %543 = vmatprep.subr.mxu0 0.0
  %544 = vmatpush1.msra.mxu0 0.0
  %545 = vmatprep.subr.mxu0 0.0
  %546 = vmatpush1.msra.mxu0 0.0
  %547 = vmatprep.subr.mxu0 0.0
  %548 = vmatpush1.msra.mxu0 0.0
  %549 = vmatprep.subr.mxu0 0.0
  %550 = vmatpush1.msra.mxu0 0.0
  %551 = vmatprep.subr.mxu0 0.0
  %552 = vmatpush1.msra.mxu0 0.0
  %553 = vmatprep.subr.mxu0 0.0
  %554 = vmatpush1.msra.mxu0 0.0
  %555 = vmatprep.subr.mxu0 0.0
  %556 = vmatpush1.msra.mxu0 0.0
  %557 = vmatprep.subr.mxu0 0.0
  %558 = vmatpush1.msra.mxu0 0.0
  %559 = vmatprep.subr.mxu0 0.0
  %560 = vmatpush1.msra.mxu0 0.0
  %561 = vmatprep.subr.mxu0 0.0
  %562 = vmatpush1.msra.mxu0 0.0
  %563 = vmatprep.subr.mxu0 0.0
  %564 = vmatpush1.msra.mxu0 0.0
  %565 = vmatprep.subr.mxu0 0.0
  %566 = vmatpush1.msra.mxu0 0.0
  %567 = vmatprep.subr.mxu0 %v391
  %568 = vmatpush1.msra.mxu0 %v388
  %569 = vmatprep.subr.mxu0 %v37
  %570 = vmatpush1.msra.mxu0 %v36
  %571 = vmatprep.subr.mxu0 %v29
  %572 = vmatpush1.msra.mxu0 %v28
  %573 = vmatprep.subr.mxu0 0.0
  %574 = vmatpush2.msra.mxu0 0.0
  %575 = vmatprep.subr.mxu0 0.0
  %576 = vmatpush2.msra.mxu0 0.0
  %577 = vmatprep.subr.mxu0 0.0
  %578 = vmatpush2.msra.mxu0 0.0
  %579 = vmatprep.subr.mxu0 0.0
  %580 = vmatpush2.msra.mxu0 0.0
  %581 = vmatprep.subr.mxu0 0.0
  %582 = vmatpush2.msra.mxu0 0.0
  %583 = vmatprep.subr.mxu0 0.0
  %584 = vmatpush2.msra.mxu0 0.0
  %585 = vmatprep.subr.mxu0 0.0
  %586 = vmatpush2.msra.mxu0 0.0
  %587 = vmatprep.subr.mxu0 0.0
  %588 = vmatpush2.msra.mxu0 0.0
  %589 = vmatprep.subr.mxu0 0.0
  %590 = vmatpush2.msra.mxu0 0.0
  %591 = vmatprep.subr.mxu0 0.0
  %592 = vmatpush2.msra.mxu0 0.0
  %593 = vmatprep.subr.mxu0 0.0
  %594 = vmatpush2.msra.mxu0 0.0
  %595 = vmatprep.subr.mxu0 0.0
  %596 = vmatpush2.msra.mxu0 0.0
  %597 = vmatprep.subr.mxu0 0.0
  %598 = vmatpush2.msra.mxu0 0.0
  %599 = vmatprep.subr.mxu0 0.0
  %600 = vmatpush2.msra.mxu0 0.0
  %601 = vmatprep.subr.mxu0 0.0
  %602 = vmatpush2.msra.mxu0 0.0
  %603 = vmatprep.subr.mxu0 0.0
  %604 = vmatpush2.msra.mxu0 0.0
  %605 = vmatprep.mubr.f32.mxu0 0.0
  %606 = vmatmul.mubr.f32.gmra.mxu0 %v372
  %v607 = vpop.f32.mrf.mxu0
  %v608 = vadd.f32 %v295, %v607
  %v609 = vpop.f32.mrf.mxu0
  %v610 = vadd.f32 %v297, %v609
  %611 = vdwg.mxu0
  %612 = vmatprep.subr.mxu0 0.0
  %613 = vmatpush1.msra.mxu0 0.0
  %614 = vmatprep.subr.mxu0 0.0
  %615 = vmatpush1.msra.mxu0 0.0
  %616 = vmatprep.subr.mxu0 0.0
  %617 = vmatpush1.msra.mxu0 0.0
  %618 = vmatprep.subr.mxu0 0.0
  %619 = vmatpush1.msra.mxu0 0.0
  %620 = vmatprep.subr.mxu0 0.0
  %621 = vmatpush1.msra.mxu0 0.0
  %622 = vmatprep.subr.mxu0 0.0
  %623 = vmatpush1.msra.mxu0 0.0
  %624 = vmatprep.subr.mxu0 0.0
  %625 = vmatpush1.msra.mxu0 0.0
  %626 = vmatprep.subr.mxu0 0.0
  %627 = vmatpush1.msra.mxu0 0.0
  %628 = vmatprep.subr.mxu0 0.0
  %629 = vmatpush1.msra.mxu0 0.0
  %630 = vmatprep.subr.mxu0 0.0
  %631 = vmatpush1.msra.mxu0 0.0
  %632 = vmatprep.subr.mxu0 0.0
  %633 = vmatpush1.msra.mxu0 0.0
  %634 = vmatprep.subr.mxu0 0.0
  %635 = vmatpush1.msra.mxu0 0.0
  %636 = vmatprep.subr.mxu0 0.0
  %637 = vmatpush1.msra.mxu0 0.0
  %638 = vmatprep.subr.mxu0 %v397
  %639 = vmatpush1.msra.mxu0 %v394
  %640 = vmatprep.subr.mxu0 %v39
  %641 = vmatpush1.msra.mxu0 %v38
  %642 = vmatprep.subr.mxu0 %v31
  %643 = vmatpush1.msra.mxu0 %v30
  %644 = vmatprep.subr.mxu0 0.0
  %645 = vmatpush2.msra.mxu0 0.0
  %646 = vmatprep.subr.mxu0 0.0
  %647 = vmatpush2.msra.mxu0 0.0
  %648 = vmatprep.subr.mxu0 0.0
  %649 = vmatpush2.msra.mxu0 0.0
  %650 = vmatprep.subr.mxu0 0.0
  %651 = vmatpush2.msra.mxu0 0.0
  %652 = vmatprep.subr.mxu0 0.0
  %653 = vmatpush2.msra.mxu0 0.0
  %654 = vmatprep.subr.mxu0 0.0
  %655 = vmatpush2.msra.mxu0 0.0
  %656 = vmatprep.subr.mxu0 0.0
  %657 = vmatpush2.msra.mxu0 0.0
  %658 = vmatprep.subr.mxu0 0.0
  %659 = vmatpush2.msra.mxu0 0.0
  %660 = vmatprep.subr.mxu0 0.0
  %661 = vmatpush2.msra.mxu0 0.0
  %662 = vmatprep.subr.mxu0 0.0
  %663 = vmatpush2.msra.mxu0 0.0
  %664 = vmatprep.subr.mxu0 0.0
  %665 = vmatpush2.msra.mxu0 0.0
  %666 = vmatprep.subr.mxu0 0.0
  %667 = vmatpush2.msra.mxu0 0.0
  %668 = vmatprep.subr.mxu0 0.0
  %669 = vmatpush2.msra.mxu0 0.0
  %670 = vmatprep.subr.mxu0 0.0
  %671 = vmatpush2.msra.mxu0 0.0
  %672 = vmatprep.subr.mxu0 0.0
  %673 = vmatpush2.msra.mxu0 0.0
  %674 = vmatprep.subr.mxu0 0.0
  %675 = vmatpush2.msra.mxu0 0.0
  %676 = vmatprep.mubr.f32.mxu0 0.0
  %677 = vmatmul.mubr.f32.gmra.mxu0 %v372
  %v678 = vpop.f32.mrf.mxu0
  %v679 = vadd.f32 %v366, %v678
  %v680 = vpop.f32.mrf.mxu0
  %v681 = vadd.f32 %v368, %v680
  %682 = vdwg.mxu0
  %v683 = vld [vmem:[%s5] ss:$8 sm:$0xf]
  %v684 = vld [vmem:[%s5] ss:$8 sm:$0xf0]
  %v685 = vor.u32 %v683, %v684
  %v687 = vlaneseq
  %v688 = vshrl.u32 %v687, 7
  %v689 = vsub.s32 0, %v688
  %v690 = vrot.slane %v685, %v689
  %v691 = vlaneseq
  %v692 = vshrl.u32 %v691, 7
  %v693 = vsub.s32 1, %v692
  %v694 = vrot.slane %v685, %v693
  %v695 = vlaneseq
  %v696 = vshrl.u32 %v695, 7
  %v697 = vsub.s32 2, %v696
  %v698 = vrot.slane %v685, %v697
  %v699 = vlaneseq
  %v700 = vshrl.u32 %v699, 7
  %v701 = vsub.s32 3, %v700
  %v702 = vrot.slane %v685, %v701
  %v703 = vlaneseq
  %v704 = vshrl.u32 %v703, 7
  %v705 = vsub.s32 4, %v704
  %v706 = vrot.slane %v685, %v705
  %v707 = vlaneseq
  %v708 = vshrl.u32 %v707, 7
  %v709 = vsub.s32 5, %v708
  %v710 = vrot.slane %v685, %v709
  %v711 = vlaneseq
  %v712 = vshrl.u32 %v711, 7
  %v713 = vsub.s32 6, %v712
  %v714 = vrot.slane %v685, %v713
  %v715 = vlaneseq
  %v716 = vshrl.u32 %v715, 7
  %v717 = vsub.s32 7, %v716
  %v718 = vrot.slane %v685, %v717
  %v727 = vadd.f32 %v466, %v690
  %v728 = vadd.f32 %v468, %v694
  %v729 = vadd.f32 %v537, %v698
  %v730 = vadd.f32 %v539, %v702
  %v731 = vadd.f32 %v608, %v706
  %v732 = vadd.f32 %v610, %v710
  %v733 = vadd.f32 %v679, %v714
  %v734 = vadd.f32 %v681, %v718
  %v735 = vmax.f32 %v727, 0.0
  %v736 = vmax.f32 %v728, 0.0
  %v737 = vmax.f32 %v729, 0.0
  %v738 = vmax.f32 %v730, 0.0
  %v739 = vmax.f32 %v731, 0.0
  %v740 = vmax.f32 %v732, 0.0
  %v741 = vmax.f32 %v733, 0.0
  %v742 = vmax.f32 %v734, 0.0
  %v743 = vld [vmem:[%s4] sm:$0xff]
  %v744 = vld [vmem:[%s4 + $0x8] sm:$0xff]
  %v745 = vld [vmem:[%s4 + $0x10] sm:$0xff]
  %v746 = vld [vmem:[%s4 + $0x18] sm:$0xff]
  %v747 = vld [vmem:[%s4 + $0x20] sm:$0xff]
  %v748 = vld [vmem:[%s4 + $0x28] sm:$0xff]
  %v749 = vld [vmem:[%s4 + $0x30] sm:$0xff]
  %v750 = vld [vmem:[%s4 + $0x38] sm:$0xff]
  %v751 = vld [vmem:[%s4 + $0x40] sm:$0xff]
  %v752 = vld [vmem:[%s4 + $0x48] sm:$0xff]
  %v753 = vld [vmem:[%s4 + $0x50] sm:$0xff]
  %v754 = vld [vmem:[%s4 + $0x58] sm:$0xff]
  %v755 = vld [vmem:[%s4 + $0x60] sm:$0xff]
  %v756 = vld [vmem:[%s4 + $0x68] sm:$0xff]
  %v757 = vld [vmem:[%s4 + $0x70] sm:$0xff]
  %v758 = vld [vmem:[%s4 + $0x78] sm:$0xff]
  %v759 = vld [vmem:[%s4 + $0x80] sm:$0xff]
  %v760 = vld [vmem:[%s4 + $0x88] sm:$0xff]
  %v761 = vld [vmem:[%s4 + $0x90] sm:$0xff]
  %v762 = vld [vmem:[%s4 + $0x98] sm:$0xff]
  %v763 = vld [vmem:[%s4 + $0xa0] sm:$0xff]
  %v764 = vld [vmem:[%s4 + $0xa8] sm:$0xff]
  %v765 = vld [vmem:[%s4 + $0xb0] sm:$0xff]
  %v766 = vld [vmem:[%s4 + $0xb8] sm:$0xff]
  %v767 = vld [vmem:[%s4 + $0xc0] sm:$0xff]
  %v768 = vld [vmem:[%s4 + $0xc8] sm:$0xff]
  %v769 = vld [vmem:[%s4 + $0xd0] sm:$0xff]
  %v770 = vld [vmem:[%s4 + $0xd8] sm:$0xff]
  %v771 = vld [vmem:[%s4 + $0xe0] sm:$0xff]
  %v772 = vld [vmem:[%s4 + $0xe8] sm:$0xff]
  %v773 = vld [vmem:[%s4 + $0xf0] sm:$0xff]
  %v774 = vld [vmem:[%s4 + $0xf8] sm:$0xff]
  %v775 = vld [vmem:[%s4 + $0x100] sm:$0xff]
  %v776 = vld [vmem:[%s4 + $0x108] sm:$0xff]
  %v777 = vld [vmem:[%s4 + $0x110] sm:$0xff]
  %v778 = vld [vmem:[%s4 + $0x118] sm:$0xff]
  %v779 = vld [vmem:[%s4 + $0x120] sm:$0xff]
  %v780 = vld [vmem:[%s4 + $0x128] sm:$0xff]
  %v781 = vld [vmem:[%s4 + $0x130] sm:$0xff]
  %v782 = vld [vmem:[%s4 + $0x138] sm:$0xff]
  %v783 = vld [vmem:[%s4 + $0x140] sm:$0xff]
  %v784 = vld [vmem:[%s4 + $0x148] sm:$0xff]
  %v785 = vld [vmem:[%s4 + $0x150] sm:$0xff]
  %v786 = vld [vmem:[%s4 + $0x158] sm:$0xff]
  %v787 = vld [vmem:[%s4 + $0x160] sm:$0xff]
  %v788 = vld [vmem:[%s4 + $0x168] sm:$0xff]
  %v789 = vld [vmem:[%s4 + $0x170] sm:$0xff]
  %v790 = vld [vmem:[%s4 + $0x178] sm:$0xff]
  %v791 = vld [vmem:[%s4 + $0x180] sm:$0xff]
  %v792 = vld [vmem:[%s4 + $0x188] sm:$0xff]
  %v793 = vld [vmem:[%s4 + $0x190] sm:$0xff]
  %v794 = vld [vmem:[%s4 + $0x198] sm:$0xff]
  %v795 = vld [vmem:[%s4 + $0x1a0] sm:$0xff]
  %v796 = vld [vmem:[%s4 + $0x1a8] sm:$0xff]
  %v797 = vld [vmem:[%s4 + $0x1b0] sm:$0xff]
  %v798 = vld [vmem:[%s4 + $0x1b8] sm:$0xff]
  %v799 = vld [vmem:[%s4 + $0x1c0] sm:$0xff]
  %v800 = vld [vmem:[%s4 + $0x1c8] sm:$0xff]
  %v801 = vld [vmem:[%s4 + $0x1d0] sm:$0xff]
  %v802 = vld [vmem:[%s4 + $0x1d8] sm:$0xff]
  %v803 = vld [vmem:[%s4 + $0x1e0] sm:$0xff]
  %v804 = vld [vmem:[%s4 + $0x1e8] sm:$0xff]
  %v805 = vld [vmem:[%s4 + $0x1f0] sm:$0xff]
  %v806 = vld [vmem:[%s4 + $0x1f8] sm:$0xff]
  %v807 = vld [vmem:[%s4 + $0x200] sm:$0xff]
  %v808 = vld [vmem:[%s4 + $0x208] sm:$0xff]
  %v809 = vld [vmem:[%s4 + $0x210] sm:$0xff]
  %v810 = vld [vmem:[%s4 + $0x218] sm:$0xff]
  %v811 = vld [vmem:[%s4 + $0x220] sm:$0xff]
  %v812 = vld [vmem:[%s4 + $0x228] sm:$0xff]
  %v813 = vld [vmem:[%s4 + $0x230] sm:$0xff]
  %v814 = vld [vmem:[%s4 + $0x238] sm:$0xff]
  %v815 = vld [vmem:[%s4 + $0x240] sm:$0xff]
  %v816 = vld [vmem:[%s4 + $0x248] sm:$0xff]
  %v817 = vld [vmem:[%s4 + $0x250] sm:$0xff]
  %v818 = vld [vmem:[%s4 + $0x258] sm:$0xff]
  %v819 = vld [vmem:[%s4 + $0x260] sm:$0xff]
  %v820 = vld [vmem:[%s4 + $0x268] sm:$0xff]
  %v821 = vld [vmem:[%s4 + $0x270] sm:$0xff]
  %v822 = vld [vmem:[%s4 + $0x278] sm:$0xff]
  %v823 = vld [vmem:[%s4 + $0x280] sm:$0xff]
  %v824 = vld [vmem:[%s4 + $0x288] sm:$0xff]
  %v825 = vld [vmem:[%s4 + $0x290] sm:$0xff]
  %v826 = vld [vmem:[%s4 + $0x298] sm:$0xff]
  %v827 = vld [vmem:[%s4 + $0x2a0] sm:$0xff]
  %v828 = vld [vmem:[%s4 + $0x2a8] sm:$0xff]
  %v829 = vld [vmem:[%s4 + $0x2b0] sm:$0xff]
  %v830 = vld [vmem:[%s4 + $0x2b8] sm:$0xff]
  %v831 = vld [vmem:[%s4 + $0x2c0] sm:$0xff]
  %v832 = vld [vmem:[%s4 + $0x2c8] sm:$0xff]
  %v833 = vld [vmem:[%s4 + $0x2d0] sm:$0xff]
  %v834 = vld [vmem:[%s4 + $0x2d8] sm:$0xff]
  %v835 = vld [vmem:[%s4 + $0x2e0] sm:$0xff]
  %v836 = vld [vmem:[%s4 + $0x2e8] sm:$0xff]
  %v837 = vld [vmem:[%s4 + $0x2f0] sm:$0xff]
  %v838 = vld [vmem:[%s4 + $0x2f8] sm:$0xff]
  %v839 = vld [vmem:[%s4 + $0x300] sm:$0xff]
  %v840 = vld [vmem:[%s4 + $0x308] sm:$0xff]
  %v841 = vld [vmem:[%s4 + $0x310] sm:$0xff]
  %v842 = vld [vmem:[%s4 + $0x318] sm:$0xff]
  %v843 = vld [vmem:[%s4 + $0x320] sm:$0xff]
  %v844 = vld [vmem:[%s4 + $0x328] sm:$0xff]
  %v845 = vld [vmem:[%s4 + $0x330] sm:$0xff]
  %v846 = vld [vmem:[%s4 + $0x338] sm:$0xff]
  %v847 = vld [vmem:[%s4 + $0x340] sm:$0xff]
  %v848 = vld [vmem:[%s4 + $0x348] sm:$0xff]
  %v849 = vld [vmem:[%s4 + $0x350] sm:$0xff]
  %v850 = vld [vmem:[%s4 + $0x358] sm:$0xff]
  %v851 = vld [vmem:[%s4 + $0x360] sm:$0xff]
  %v852 = vld [vmem:[%s4 + $0x368] sm:$0xff]
  %v853 = vld [vmem:[%s4 + $0x370] sm:$0xff]
  %v854 = vld [vmem:[%s4 + $0x378] sm:$0xff]
  %v855 = vld [vmem:[%s4 + $0x380] sm:$0xff]
  %v856 = vld [vmem:[%s4 + $0x388] sm:$0xff]
  %v857 = vld [vmem:[%s4 + $0x390] sm:$0xff]
  %v858 = vld [vmem:[%s4 + $0x398] sm:$0xff]
  %v859 = vld [vmem:[%s4 + $0x3a0] sm:$0xff]
  %v860 = vld [vmem:[%s4 + $0x3a8] sm:$0xff]
  %v861 = vld [vmem:[%s4 + $0x3b0] sm:$0xff]
  %v862 = vld [vmem:[%s4 + $0x3b8] sm:$0xff]
  %v863 = vld [vmem:[%s4 + $0x3c0] sm:$0xff]
  %v864 = vld [vmem:[%s4 + $0x3c8] sm:$0xff]
  %v865 = vld [vmem:[%s4 + $0x3d0] sm:$0xff]
  %v866 = vld [vmem:[%s4 + $0x3d8] sm:$0xff]
  %v867 = vld [vmem:[%s4 + $0x3e0] sm:$0xff]
  %v868 = vld [vmem:[%s4 + $0x3e8] sm:$0xff]
  %v869 = vld [vmem:[%s4 + $0x3f0] sm:$0xff]
  %v870 = vld [vmem:[%s4 + $0x3f8] sm:$0xff]
  %v871 = vld [vmem:[%s4 + $0x400] sm:$0xff]
  %v872 = vld [vmem:[%s4 + $0x408] sm:$0xff]
  %v873 = vld [vmem:[%s4 + $0x410] sm:$0xff]
  %v874 = vld [vmem:[%s4 + $0x418] sm:$0xff]
  %v875 = vld [vmem:[%s4 + $0x420] sm:$0xff]
  %v876 = vld [vmem:[%s4 + $0x428] sm:$0xff]
  %v877 = vld [vmem:[%s4 + $0x430] sm:$0xff]
  %v878 = vld [vmem:[%s4 + $0x438] sm:$0xff]
  %v879 = vld [vmem:[%s4 + $0x440] sm:$0xff]
  %v880 = vld [vmem:[%s4 + $0x448] sm:$0xff]
  %v881 = vld [vmem:[%s4 + $0x450] sm:$0xff]
  %v882 = vld [vmem:[%s4 + $0x458] sm:$0xff]
  %v883 = vld [vmem:[%s4 + $0x460] sm:$0xff]
  %v884 = vld [vmem:[%s4 + $0x468] sm:$0xff]
  %v885 = vld [vmem:[%s4 + $0x470] sm:$0xff]
  %v886 = vld [vmem:[%s4 + $0x478] sm:$0xff]
  %v887 = vld [vmem:[%s4 + $0x480] sm:$0xff]
  %v888 = vld [vmem:[%s4 + $0x488] sm:$0xff]
  %v889 = vld [vmem:[%s4 + $0x490] sm:$0xff]
  %v890 = vld [vmem:[%s4 + $0x498] sm:$0xff]
  %v891 = vld [vmem:[%s4 + $0x4a0] sm:$0xff]
  %v892 = vld [vmem:[%s4 + $0x4a8] sm:$0xff]
  %v893 = vld [vmem:[%s4 + $0x4b0] sm:$0xff]
  %v894 = vld [vmem:[%s4 + $0x4b8] sm:$0xff]
  %v895 = vld [vmem:[%s4 + $0x4c0] sm:$0xff]
  %v896 = vld [vmem:[%s4 + $0x4c8] sm:$0xff]
  %v897 = vld [vmem:[%s4 + $0x4d0] sm:$0xff]
  %v898 = vld [vmem:[%s4 + $0x4d8] sm:$0xff]
  %v899 = vld [vmem:[%s4 + $0x4e0] sm:$0xff]
  %v900 = vld [vmem:[%s4 + $0x4e8] sm:$0xff]
  %v901 = vld [vmem:[%s4 + $0x4f0] sm:$0xff]
  %v902 = vld [vmem:[%s4 + $0x4f8] sm:$0xff]
  %v903 = vld [vmem:[%s4 + $0x500] sm:$0xff]
  %v904 = vld [vmem:[%s4 + $0x508] sm:$0xff]
  %v905 = vld [vmem:[%s4 + $0x510] sm:$0xff]
  %v906 = vld [vmem:[%s4 + $0x518] sm:$0xff]
  %v907 = vld [vmem:[%s4 + $0x520] sm:$0xff]
  %v908 = vld [vmem:[%s4 + $0x528] sm:$0xff]
  %v909 = vld [vmem:[%s4 + $0x530] sm:$0xff]
  %v910 = vld [vmem:[%s4 + $0x538] sm:$0xff]
  %v911 = vld [vmem:[%s4 + $0x540] sm:$0xff]
  %v912 = vld [vmem:[%s4 + $0x548] sm:$0xff]
  %v913 = vld [vmem:[%s4 + $0x550] sm:$0xff]
  %v914 = vld [vmem:[%s4 + $0x558] sm:$0xff]
  %v915 = vld [vmem:[%s4 + $0x560] sm:$0xff]
  %v916 = vld [vmem:[%s4 + $0x568] sm:$0xff]
  %v917 = vld [vmem:[%s4 + $0x570] sm:$0xff]
  %v918 = vld [vmem:[%s4 + $0x578] sm:$0xff]
  %v919 = vld [vmem:[%s4 + $0x580] sm:$0xff]
  %v920 = vld [vmem:[%s4 + $0x588] sm:$0xff]
  %v921 = vld [vmem:[%s4 + $0x590] sm:$0xff]
  %v922 = vld [vmem:[%s4 + $0x598] sm:$0xff]
  %v923 = vld [vmem:[%s4 + $0x5a0] sm:$0xff]
  %v924 = vld [vmem:[%s4 + $0x5a8] sm:$0xff]
  %v925 = vld [vmem:[%s4 + $0x5b0] sm:$0xff]
  %v926 = vld [vmem:[%s4 + $0x5b8] sm:$0xff]
  %v927 = vld [vmem:[%s4 + $0x5c0] sm:$0xff]
  %v928 = vld [vmem:[%s4 + $0x5c8] sm:$0xff]
  %v929 = vld [vmem:[%s4 + $0x5d0] sm:$0xff]
  %v930 = vld [vmem:[%s4 + $0x5d8] sm:$0xff]
  %v931 = vld [vmem:[%s4 + $0x5e0] sm:$0xff]
  %v932 = vld [vmem:[%s4 + $0x5e8] sm:$0xff]
  %v933 = vld [vmem:[%s4 + $0x5f0] sm:$0xff]
  %v934 = vld [vmem:[%s4 + $0x5f8] sm:$0xff]
  %s935 = scalar_lea.vmem %s5, 1
  %v936 = vld [vmem:[%s935] ss:$8 sm:$0x7]
  %v938 = vlaneseq
  %v939 = vshrl.u32 %v938, 7
  %v940 = vsub.s32 0, %v939
  %v941 = vrot.slane %v936, %v940
  %v942 = vlaneseq
  %v943 = vshrl.u32 %v942, 7
  %v944 = vsub.s32 1, %v943
  %v945 = vrot.slane %v936, %v944
  %v946 = vlaneseq
  %v947 = vshrl.u32 %v946, 7
  %v948 = vsub.s32 2, %v947
  %v949 = vrot.slane %v936, %v948
  %953 = vmatprep.subr.mxu0 %v789
  %954 = vmatpush1.msra.mxu0 %v788
  %955 = vmatprep.subr.mxu0 %v786
  %956 = vmatpush1.msra.mxu0 %v785
  %957 = vmatprep.subr.mxu0 %v783
  %958 = vmatpush1.msra.mxu0 %v782
  %959 = vmatprep.subr.mxu0 %v780
  %960 = vmatpush1.msra.mxu0 %v779
  %961 = vmatprep.subr.mxu0 %v777
  %962 = vmatpush1.msra.mxu0 %v776
  %963 = vmatprep.subr.mxu0 %v774
  %964 = vmatpush1.msra.mxu0 %v773
  %965 = vmatprep.subr.mxu0 %v771
  %966 = vmatpush1.msra.mxu0 %v770
  %967 = vmatprep.subr.mxu0 %v768
  %968 = vmatpush1.msra.mxu0 %v767
  %969 = vmatprep.subr.mxu0 %v765
  %970 = vmatpush1.msra.mxu0 %v764
  %971 = vmatprep.subr.mxu0 %v762
  %972 = vmatpush1.msra.mxu0 %v761
  %973 = vmatprep.subr.mxu0 %v759
  %974 = vmatpush1.msra.mxu0 %v758
  %975 = vmatprep.subr.mxu0 %v756
  %976 = vmatpush1.msra.mxu0 %v755
  %977 = vmatprep.subr.mxu0 %v753
  %978 = vmatpush1.msra.mxu0 %v752
  %979 = vmatprep.subr.mxu0 %v750
  %980 = vmatpush1.msra.mxu0 %v749
  %981 = vmatprep.subr.mxu0 %v747
  %982 = vmatpush1.msra.mxu0 %v746
  %983 = vmatprep.subr.mxu0 %v744
  %984 = vmatpush1.msra.mxu0 %v743
  %985 = vmatprep.subr.mxu0 %v837
  %986 = vmatpush2.msra.mxu0 %v836
  %987 = vmatprep.subr.mxu0 %v834
  %988 = vmatpush2.msra.mxu0 %v833
  %989 = vmatprep.subr.mxu0 %v831
  %990 = vmatpush2.msra.mxu0 %v830
  %991 = vmatprep.subr.mxu0 %v828
  %992 = vmatpush2.msra.mxu0 %v827
  %993 = vmatprep.subr.mxu0 %v825
  %994 = vmatpush2.msra.mxu0 %v824
  %995 = vmatprep.subr.mxu0 %v822
  %996 = vmatpush2.msra.mxu0 %v821
  %997 = vmatprep.subr.mxu0 %v819
  %998 = vmatpush2.msra.mxu0 %v818
  %999 = vmatprep.subr.mxu0 %v816
  %1000 = vmatpush2.msra.mxu0 %v815
  %1001 = vmatprep.subr.mxu0 %v813
  %1002 = vmatpush2.msra.mxu0 %v812
  %1003 = vmatprep.subr.mxu0 %v810
  %1004 = vmatpush2.msra.mxu0 %v809
  %1005 = vmatprep.subr.mxu0 %v807
  %1006 = vmatpush2.msra.mxu0 %v806
  %1007 = vmatprep.subr.mxu0 %v804
  %1008 = vmatpush2.msra.mxu0 %v803
  %1009 = vmatprep.subr.mxu0 %v801
  %1010 = vmatpush2.msra.mxu0 %v800
  %1011 = vmatprep.subr.mxu0 %v798
  %1012 = vmatpush2.msra.mxu0 %v797
  %1013 = vmatprep.subr.mxu0 %v795
  %1014 = vmatpush2.msra.mxu0 %v794
  %1015 = vmatprep.subr.mxu0 %v792
  %1016 = vmatpush2.msra.mxu0 %v791
  %1017 = vmatprep.mubr.f32.mxu0 %v736
  %1018 = vmatmul.mubr.f32.gmra.mxu0 %v735
  %v1019 = vpop.f32.mrf.mxu0
  %v1020 = vadd.f32 %v941, %v1019
  %v1021 = vpop.f32.mrf.mxu0
  %v1022 = vadd.f32 %v945, %v1021
  %1023 = vdwg.mxu0
  %1024 = vmatprep.subr.mxu0 %v885
  %1025 = vmatpush1.msra.mxu0 %v884
  %1026 = vmatprep.subr.mxu0 %v882
  %1027 = vmatpush1.msra.mxu0 %v881
  %1028 = vmatprep.subr.mxu0 %v879
  %1029 = vmatpush1.msra.mxu0 %v878
  %1030 = vmatprep.subr.mxu0 %v876
  %1031 = vmatpush1.msra.mxu0 %v875
  %1032 = vmatprep.subr.mxu0 %v873
  %1033 = vmatpush1.msra.mxu0 %v872
  %1034 = vmatprep.subr.mxu0 %v870
  %1035 = vmatpush1.msra.mxu0 %v869
  %1036 = vmatprep.subr.mxu0 %v867
  %1037 = vmatpush1.msra.mxu0 %v866
  %1038 = vmatprep.subr.mxu0 %v864
  %1039 = vmatpush1.msra.mxu0 %v863
  %1040 = vmatprep.subr.mxu0 %v861
  %1041 = vmatpush1.msra.mxu0 %v860
  %1042 = vmatprep.subr.mxu0 %v858
  %1043 = vmatpush1.msra.mxu0 %v857
  %1044 = vmatprep.subr.mxu0 %v855
  %1045 = vmatpush1.msra.mxu0 %v854
  %1046 = vmatprep.subr.mxu0 %v852
  %1047 = vmatpush1.msra.mxu0 %v851
  %1048 = vmatprep.subr.mxu0 %v849
  %1049 = vmatpush1.msra.mxu0 %v848
  %1050 = vmatprep.subr.mxu0 %v846
  %1051 = vmatpush1.msra.mxu0 %v845
  %1052 = vmatprep.subr.mxu0 %v843
  %1053 = vmatpush1.msra.mxu0 %v842
  %1054 = vmatprep.subr.mxu0 %v840
  %1055 = vmatpush1.msra.mxu0 %v839
  %1056 = vmatprep.subr.mxu0 %v933
  %1057 = vmatpush2.msra.mxu0 %v932
  %1058 = vmatprep.subr.mxu0 %v930
  %1059 = vmatpush2.msra.mxu0 %v929
  %1060 = vmatprep.subr.mxu0 %v927
  %1061 = vmatpush2.msra.mxu0 %v926
  %1062 = vmatprep.subr.mxu0 %v924
  %1063 = vmatpush2.msra.mxu0 %v923
  %1064 = vmatprep.subr.mxu0 %v921
  %1065 = vmatpush2.msra.mxu0 %v920
  %1066 = vmatprep.subr.mxu0 %v918
  %1067 = vmatpush2.msra.mxu0 %v917
  %1068 = vmatprep.subr.mxu0 %v915
  %1069 = vmatpush2.msra.mxu0 %v914
  %1070 = vmatprep.subr.mxu0 %v912
  %1071 = vmatpush2.msra.mxu0 %v911
  %1072 = vmatprep.subr.mxu0 %v909
  %1073 = vmatpush2.msra.mxu0 %v908
  %1074 = vmatprep.subr.mxu0 %v906
  %1075 = vmatpush2.msra.mxu0 %v905
  %1076 = vmatprep.subr.mxu0 %v903
  %1077 = vmatpush2.msra.mxu0 %v902
  %1078 = vmatprep.subr.mxu0 %v900
  %1079 = vmatpush2.msra.mxu0 %v899
  %1080 = vmatprep.subr.mxu0 %v897
  %1081 = vmatpush2.msra.mxu0 %v896
  %1082 = vmatprep.subr.mxu0 %v894
  %1083 = vmatpush2.msra.mxu0 %v893
  %1084 = vmatprep.subr.mxu0 %v891
  %1085 = vmatpush2.msra.mxu0 %v890
  %1086 = vmatprep.subr.mxu0 %v888
  %1087 = vmatpush2.msra.mxu0 %v887
  %1088 = vmatprep.mubr.f32.mxu0 %v738
  %1089 = vmatmul.mubr.f32.gmra.mxu0 %v737
  %v1090 = vpop.f32.mrf.mxu0
  %v1091 = vadd.f32 %v1020, %v1090
  %v1092 = vpop.f32.mrf.mxu0
  %v1093 = vadd.f32 %v1022, %v1092
  %1094 = vdwg.mxu0
  %1095 = vmatprep.subr.mxu0 0.0
  %1096 = vmatpush1.msra.mxu0 %v790
  %1097 = vmatprep.subr.mxu0 0.0
  %1098 = vmatpush1.msra.mxu0 %v787
  %1099 = vmatprep.subr.mxu0 0.0
  %1100 = vmatpush1.msra.mxu0 %v784
  %1101 = vmatprep.subr.mxu0 0.0
  %1102 = vmatpush1.msra.mxu0 %v781
  %1103 = vmatprep.subr.mxu0 0.0
  %1104 = vmatpush1.msra.mxu0 %v778
  %1105 = vmatprep.subr.mxu0 0.0
  %1106 = vmatpush1.msra.mxu0 %v775
  %1107 = vmatprep.subr.mxu0 0.0
  %1108 = vmatpush1.msra.mxu0 %v772
  %1109 = vmatprep.subr.mxu0 0.0
  %1110 = vmatpush1.msra.mxu0 %v769
  %1111 = vmatprep.subr.mxu0 0.0
  %1112 = vmatpush1.msra.mxu0 %v766
  %1113 = vmatprep.subr.mxu0 0.0
  %1114 = vmatpush1.msra.mxu0 %v763
  %1115 = vmatprep.subr.mxu0 0.0
  %1116 = vmatpush1.msra.mxu0 %v760
  %1117 = vmatprep.subr.mxu0 0.0
  %1118 = vmatpush1.msra.mxu0 %v757
  %1119 = vmatprep.subr.mxu0 0.0
  %1120 = vmatpush1.msra.mxu0 %v754
  %1121 = vmatprep.subr.mxu0 0.0
  %1122 = vmatpush1.msra.mxu0 %v751
  %1123 = vmatprep.subr.mxu0 0.0
  %1124 = vmatpush1.msra.mxu0 %v748
  %1125 = vmatprep.subr.mxu0 0.0
  %1126 = vmatpush1.msra.mxu0 %v745
  %1127 = vmatprep.subr.mxu0 0.0
  %1128 = vmatpush2.msra.mxu0 %v838
  %1129 = vmatprep.subr.mxu0 0.0
  %1130 = vmatpush2.msra.mxu0 %v835
  %1131 = vmatprep.subr.mxu0 0.0
  %1132 = vmatpush2.msra.mxu0 %v832
  %1133 = vmatprep.subr.mxu0 0.0
  %1134 = vmatpush2.msra.mxu0 %v829
  %1135 = vmatprep.subr.mxu0 0.0
  %1136 = vmatpush2.msra.mxu0 %v826
  %1137 = vmatprep.subr.mxu0 0.0
  %1138 = vmatpush2.msra.mxu0 %v823
  %1139 = vmatprep.subr.mxu0 0.0
  %1140 = vmatpush2.msra.mxu0 %v820
  %1141 = vmatprep.subr.mxu0 0.0
  %1142 = vmatpush2.msra.mxu0 %v817
  %1143 = vmatprep.subr.mxu0 0.0
  %1144 = vmatpush2.msra.mxu0 %v814
  %1145 = vmatprep.subr.mxu0 0.0
  %1146 = vmatpush2.msra.mxu0 %v811
  %1147 = vmatprep.subr.mxu0 0.0
  %1148 = vmatpush2.msra.mxu0 %v808
  %1149 = vmatprep.subr.mxu0 0.0
  %1150 = vmatpush2.msra.mxu0 %v805
  %1151 = vmatprep.subr.mxu0 0.0
  %1152 = vmatpush2.msra.mxu0 %v802
  %1153 = vmatprep.subr.mxu0 0.0
  %1154 = vmatpush2.msra.mxu0 %v799
  %1155 = vmatprep.subr.mxu0 0.0
  %1156 = vmatpush2.msra.mxu0 %v796
  %1157 = vmatprep.subr.mxu0 0.0
  %1158 = vmatpush2.msra.mxu0 %v793
  %1159 = vmatprep.mubr.f32.mxu0 %v736
  %1160 = vmatmul.mubr.f32.gmra.mxu0 %v735
  %v1161 = vpop.f32.mrf.mxu0
  %v1162 = vadd.f32 %v949, %v1161
  %v1163 = vpop.f32.mrf.mxu0
  %1164 = vdwg.mxu0
  %1165 = vmatprep.subr.mxu0 0.0
  %1166 = vmatpush1.msra.mxu0 %v886
  %1167 = vmatprep.subr.mxu0 0.0
  %1168 = vmatpush1.msra.mxu0 %v883
  %1169 = vmatprep.subr.mxu0 0.0
  %1170 = vmatpush1.msra.mxu0 %v880
  %1171 = vmatprep.subr.mxu0 0.0
  %1172 = vmatpush1.msra.mxu0 %v877
  %1173 = vmatprep.subr.mxu0 0.0
  %1174 = vmatpush1.msra.mxu0 %v874
  %1175 = vmatprep.subr.mxu0 0.0
  %1176 = vmatpush1.msra.mxu0 %v871
  %1177 = vmatprep.subr.mxu0 0.0
  %1178 = vmatpush1.msra.mxu0 %v868
  %1179 = vmatprep.subr.mxu0 0.0
  %1180 = vmatpush1.msra.mxu0 %v865
  %1181 = vmatprep.subr.mxu0 0.0
  %1182 = vmatpush1.msra.mxu0 %v862
  %1183 = vmatprep.subr.mxu0 0.0
  %1184 = vmatpush1.msra.mxu0 %v859
  %1185 = vmatprep.subr.mxu0 0.0
  %1186 = vmatpush1.msra.mxu0 %v856
  %1187 = vmatprep.subr.mxu0 0.0
  %1188 = vmatpush1.msra.mxu0 %v853
  %1189 = vmatprep.subr.mxu0 0.0
  %1190 = vmatpush1.msra.mxu0 %v850
  %1191 = vmatprep.subr.mxu0 0.0
  %1192 = vmatpush1.msra.mxu0 %v847
  %1193 = vmatprep.subr.mxu0 0.0
  %1194 = vmatpush1.msra.mxu0 %v844
  %1195 = vmatprep.subr.mxu0 0.0
  %1196 = vmatpush1.msra.mxu0 %v841
  %1197 = vmatprep.subr.mxu0 0.0
  %1198 = vmatpush2.msra.mxu0 %v934
  %1199 = vmatprep.subr.mxu0 0.0
  %1200 = vmatpush2.msra.mxu0 %v931
  %1201 = vmatprep.subr.mxu0 0.0
  %1202 = vmatpush2.msra.mxu0 %v928
  %1203 = vmatprep.subr.mxu0 0.0
  %1204 = vmatpush2.msra.mxu0 %v925
  %1205 = vmatprep.subr.mxu0 0.0
  %1206 = vmatpush2.msra.mxu0 %v922
  %1207 = vmatprep.subr.mxu0 0.0
  %1208 = vmatpush2.msra.mxu0 %v919
  %1209 = vmatprep.subr.mxu0 0.0
  %1210 = vmatpush2.msra.mxu0 %v916
  %1211 = vmatprep.subr.mxu0 0.0
  %1212 = vmatpush2.msra.mxu0 %v913
  %1213 = vmatprep.subr.mxu0 0.0
  %1214 = vmatpush2.msra.mxu0 %v910
  %1215 = vmatprep.subr.mxu0 0.0
  %1216 = vmatpush2.msra.mxu0 %v907
  %1217 = vmatprep.subr.mxu0 0.0
  %1218 = vmatpush2.msra.mxu0 %v904
  %1219 = vmatprep.subr.mxu0 0.0
  %1220 = vmatpush2.msra.mxu0 %v901
  %1221 = vmatprep.subr.mxu0 0.0
  %1222 = vmatpush2.msra.mxu0 %v898
  %1223 = vmatprep.subr.mxu0 0.0
  %1224 = vmatpush2.msra.mxu0 %v895
  %1225 = vmatprep.subr.mxu0 0.0
  %1226 = vmatpush2.msra.mxu0 %v892
  %1227 = vmatprep.subr.mxu0 0.0
  %1228 = vmatpush2.msra.mxu0 %v889
  %1229 = vmatprep.mubr.f32.mxu0 %v738
  %1230 = vmatmul.mubr.f32.gmra.mxu0 %v737
  %v1231 = vpop.f32.mrf.mxu0
  %v1232 = vadd.f32 %v1162, %v1231
  %v1233 = vpop.f32.mrf.mxu0
  %1234 = vdwg.mxu0
  %v1235 = vmax.f32 %v1091, 0.0
  %v1236 = vmax.f32 %v1093, 0.0
  %v1237 = vmax.f32 %v1232, 0.0
  %s1238 = scalar_lea.vmem %s4, 1536
  %v1239 = vld [vmem:[%s1238] sm:$0xff]
  %v1240 = vld [vmem:[%s1238 + $0x8] sm:$0xff]
  %v1241 = vld [vmem:[%s1238 + $0x10] sm:$0xff]
  %v1242 = vld [vmem:[%s1238 + $0x18] sm:$0xff]
  %v1243 = vld [vmem:[%s1238 + $0x20] sm:$0xff]
  %v1244 = vld [vmem:[%s1238 + $0x28] sm:$0xff]
  %v1245 = vld [vmem:[%s1238 + $0x30] sm:$0xff]
  %v1246 = vld [vmem:[%s1238 + $0x38] sm:$0xff]
  %v1247 = vld [vmem:[%s1238 + $0x40] sm:$0xff]
  %v1248 = vld [vmem:[%s1238 + $0x48] sm:$0xff]
  %v1249 = vld [vmem:[%s1238 + $0x50] sm:$0xff]
  %v1250 = vld [vmem:[%s1238 + $0x58] sm:$0xff]
  %v1251 = vld [vmem:[%s1238 + $0x60] sm:$0xff]
  %v1252 = vld [vmem:[%s1238 + $0x68] sm:$0xff]
  %v1253 = vld [vmem:[%s1238 + $0x70] sm:$0xff]
  %v1254 = vld [vmem:[%s1238 + $0x78] sm:$0xff]
  %v1255 = vld [vmem:[%s1238 + $0x80] sm:$0xff]
  %v1256 = vld [vmem:[%s1238 + $0x88] sm:$0xff]
  %v1257 = vld [vmem:[%s1238 + $0x90] sm:$0xff]
  %v1258 = vld [vmem:[%s1238 + $0x98] sm:$0xff]
  %v1259 = vld [vmem:[%s1238 + $0xa0] sm:$0xff]
  %v1260 = vld [vmem:[%s1238 + $0xa8] sm:$0xff]
  %v1261 = vld [vmem:[%s1238 + $0xb0] sm:$0xff]
  %v1262 = vld [vmem:[%s1238 + $0xb8] sm:$0xff]
  %v1263 = vld [vmem:[%s1238 + $0xc0] sm:$0xff]
  %v1264 = vld [vmem:[%s1238 + $0xc8] sm:$0xff]
  %v1265 = vld [vmem:[%s1238 + $0xd0] sm:$0xff]
  %v1266 = vld [vmem:[%s1238 + $0xd8] sm:$0xff]
  %v1267 = vld [vmem:[%s1238 + $0xe0] sm:$0xff]
  %v1268 = vld [vmem:[%s1238 + $0xe8] sm:$0xff]
  %v1269 = vld [vmem:[%s1238 + $0xf0] sm:$0xff]
  %v1270 = vld [vmem:[%s1238 + $0xf8] sm:$0xff]
  %v1271 = vld [vmem:[%s1238 + $0x100] sm:$0xff]
  %v1272 = vld [vmem:[%s1238 + $0x108] sm:$0xff]
  %v1273 = vld [vmem:[%s1238 + $0x110] sm:$0xff]
  %v1274 = vld [vmem:[%s1238 + $0x118] sm:$0xff]
  %v1275 = vld [vmem:[%s1238 + $0x120] sm:$0xff]
  %v1276 = vld [vmem:[%s1238 + $0x128] sm:$0xff]
  %v1277 = vld [vmem:[%s1238 + $0x130] sm:$0xff]
  %v1278 = vld [vmem:[%s1238 + $0x138] sm:$0xff]
  %v1279 = vld [vmem:[%s1238 + $0x140] sm:$0xff]
  %v1280 = vld [vmem:[%s1238 + $0x148] sm:$0xff]
  %v1281 = vld [vmem:[%s1238 + $0x150] sm:$0xff]
  %v1282 = vld [vmem:[%s1238 + $0x158] sm:$0xff]
  %v1283 = vld [vmem:[%s1238 + $0x160] sm:$0xff]
  %v1284 = vld [vmem:[%s1238 + $0x168] sm:$0xff]
  %v1285 = vld [vmem:[%s1238 + $0x170] sm:$0xff]
  %v1286 = vld [vmem:[%s1238 + $0x178] sm:$0xff]
  %v1287 = vld [vmem:[%s1238 + $0x180] sm:$0xff]
  %v1288 = vld [vmem:[%s1238 + $0x188] sm:$0xff]
  %v1289 = vld [vmem:[%s1238 + $0x190] sm:$0xff]
  %v1290 = vld [vmem:[%s1238 + $0x198] sm:$0xff]
  %v1291 = vld [vmem:[%s1238 + $0x1a0] sm:$0xff]
  %v1292 = vld [vmem:[%s1238 + $0x1a8] sm:$0xff]
  %v1293 = vld [vmem:[%s1238 + $0x1b0] sm:$0xff]
  %v1294 = vld [vmem:[%s1238 + $0x1b8] sm:$0xff]
  %v1295 = vld [vmem:[%s1238 + $0x1c0] sm:$0xff]
  %v1296 = vld [vmem:[%s1238 + $0x1c8] sm:$0xff]
  %v1297 = vld [vmem:[%s1238 + $0x1d0] sm:$0xff]
  %v1298 = vld [vmem:[%s1238 + $0x1d8] sm:$0xff]
  %v1299 = vld [vmem:[%s1238 + $0x1e0] sm:$0xff]
  %v1300 = vld [vmem:[%s1238 + $0x1e8] sm:$0xff]
  %v1301 = vld [vmem:[%s1238 + $0x1f0] sm:$0xff]
  %v1302 = vld [vmem:[%s1238 + $0x1f8] sm:$0xff]
  %v1303 = vld [vmem:[%s1238 + $0x200] sm:$0xff]
  %v1304 = vld [vmem:[%s1238 + $0x208] sm:$0xff]
  %v1305 = vld [vmem:[%s1238 + $0x210] sm:$0xff]
  %v1306 = vld [vmem:[%s1238 + $0x218] sm:$0xff]
  %v1307 = vld [vmem:[%s1238 + $0x220] sm:$0xff]
  %v1308 = vld [vmem:[%s1238 + $0x228] sm:$0xff]
  %v1309 = vld [vmem:[%s1238 + $0x230] sm:$0xff]
  %v1310 = vld [vmem:[%s1238 + $0x238] sm:$0xff]
  %v1311 = vld [vmem:[%s1238 + $0x240] sm:$0xff]
  %v1312 = vld [vmem:[%s1238 + $0x248] sm:$0xff]
  %v1313 = vld [vmem:[%s1238 + $0x250] sm:$0xff]
  %v1314 = vld [vmem:[%s1238 + $0x258] sm:$0xff]
  %v1315 = vld [vmem:[%s1238 + $0x260] sm:$0xff]
  %v1316 = vld [vmem:[%s1238 + $0x268] sm:$0xff]
  %v1317 = vld [vmem:[%s1238 + $0x270] sm:$0xff]
  %v1318 = vld [vmem:[%s1238 + $0x278] sm:$0xff]
  %v1319 = vld [vmem:[%s1238 + $0x280] sm:$0xff]
  %v1320 = vld [vmem:[%s1238 + $0x288] sm:$0xff]
  %v1321 = vld [vmem:[%s1238 + $0x290] sm:$0xff]
  %v1322 = vld [vmem:[%s1238 + $0x298] sm:$0xff]
  %v1323 = vld [vmem:[%s1238 + $0x2a0] sm:$0xff]
  %v1324 = vld [vmem:[%s1238 + $0x2a8] sm:$0xff]
  %v1325 = vld [vmem:[%s1238 + $0x2b0] sm:$0xff]
  %v1326 = vld [vmem:[%s1238 + $0x2b8] sm:$0xff]
  %v1327 = vld [vmem:[%s1238 + $0x2c0] sm:$0xff]
  %v1328 = vld [vmem:[%s1238 + $0x2c8] sm:$0xff]
  %v1329 = vld [vmem:[%s1238 + $0x2d0] sm:$0xff]
  %v1330 = vld [vmem:[%s1238 + $0x2d8] sm:$0xff]
  %v1331 = vld [vmem:[%s1238 + $0x2e0] sm:$0xff]
  %v1332 = vld [vmem:[%s1238 + $0x2e8] sm:$0xff]
  %v1333 = vld [vmem:[%s1238 + $0x2f0] sm:$0xff]
  %v1334 = vld [vmem:[%s1238 + $0x2f8] sm:$0xff]
  %v1335 = vld [vmem:[%s1238 + $0x300] sm:$0xff]
  %v1336 = vld [vmem:[%s1238 + $0x308] sm:$0xff]
  %v1337 = vld [vmem:[%s1238 + $0x310] sm:$0xff]
  %v1338 = vld [vmem:[%s1238 + $0x318] sm:$0xff]
  %v1339 = vld [vmem:[%s1238 + $0x320] sm:$0xff]
  %v1340 = vld [vmem:[%s1238 + $0x328] sm:$0xff]
  %v1341 = vld [vmem:[%s1238 + $0x330] sm:$0xff]
  %v1342 = vld [vmem:[%s1238 + $0x338] sm:$0xff]
  %v1343 = vld [vmem:[%s1238 + $0x340] sm:$0xff]
  %v1344 = vld [vmem:[%s1238 + $0x348] sm:$0xff]
  %v1345 = vld [vmem:[%s1238 + $0x350] sm:$0xff]
  %v1346 = vld [vmem:[%s1238 + $0x358] sm:$0xff]
  %v1347 = vld [vmem:[%s1238 + $0x360] sm:$0xff]
  %v1348 = vld [vmem:[%s1238 + $0x368] sm:$0xff]
  %v1349 = vld [vmem:[%s1238 + $0x370] sm:$0xff]
  %v1350 = vld [vmem:[%s1238 + $0x378] sm:$0xff]
  %v1351 = vld [vmem:[%s1238 + $0x380] sm:$0xff]
  %v1352 = vld [vmem:[%s1238 + $0x388] sm:$0xff]
  %v1353 = vld [vmem:[%s1238 + $0x390] sm:$0xff]
  %v1354 = vld [vmem:[%s1238 + $0x398] sm:$0xff]
  %v1355 = vld [vmem:[%s1238 + $0x3a0] sm:$0xff]
  %v1356 = vld [vmem:[%s1238 + $0x3a8] sm:$0xff]
  %v1357 = vld [vmem:[%s1238 + $0x3b0] sm:$0xff]
  %v1358 = vld [vmem:[%s1238 + $0x3b8] sm:$0xff]
  %v1359 = vld [vmem:[%s1238 + $0x3c0] sm:$0xff]
  %v1360 = vld [vmem:[%s1238 + $0x3c8] sm:$0xff]
  %v1361 = vld [vmem:[%s1238 + $0x3d0] sm:$0xff]
  %v1362 = vld [vmem:[%s1238 + $0x3d8] sm:$0xff]
  %v1363 = vld [vmem:[%s1238 + $0x3e0] sm:$0xff]
  %v1364 = vld [vmem:[%s1238 + $0x3e8] sm:$0xff]
  %v1365 = vld [vmem:[%s1238 + $0x3f0] sm:$0xff]
  %v1366 = vld [vmem:[%s1238 + $0x3f8] sm:$0xff]
  %v1367 = vld [vmem:[%s1238 + $0x400] sm:$0xff]
  %v1368 = vld [vmem:[%s1238 + $0x408] sm:$0xff]
  %v1369 = vld [vmem:[%s1238 + $0x410] sm:$0xff]
  %v1370 = vld [vmem:[%s1238 + $0x418] sm:$0xff]
  %v1371 = vld [vmem:[%s1238 + $0x420] sm:$0xff]
  %v1372 = vld [vmem:[%s1238 + $0x428] sm:$0xff]
  %v1373 = vld [vmem:[%s1238 + $0x430] sm:$0xff]
  %v1374 = vld [vmem:[%s1238 + $0x438] sm:$0xff]
  %v1375 = vld [vmem:[%s1238 + $0x440] sm:$0xff]
  %v1376 = vld [vmem:[%s1238 + $0x448] sm:$0xff]
  %v1377 = vld [vmem:[%s1238 + $0x450] sm:$0xff]
  %v1378 = vld [vmem:[%s1238 + $0x458] sm:$0xff]
  %v1379 = vld [vmem:[%s1238 + $0x460] sm:$0xff]
  %v1380 = vld [vmem:[%s1238 + $0x468] sm:$0xff]
  %v1381 = vld [vmem:[%s1238 + $0x470] sm:$0xff]
  %v1382 = vld [vmem:[%s1238 + $0x478] sm:$0xff]
  %v1383 = vld [vmem:[%s1238 + $0x480] sm:$0xff]
  %v1384 = vld [vmem:[%s1238 + $0x488] sm:$0xff]
  %v1385 = vld [vmem:[%s1238 + $0x490] sm:$0xff]
  %v1386 = vld [vmem:[%s1238 + $0x498] sm:$0xff]
  %v1387 = vld [vmem:[%s1238 + $0x4a0] sm:$0xff]
  %v1388 = vld [vmem:[%s1238 + $0x4a8] sm:$0xff]
  %v1389 = vld [vmem:[%s1238 + $0x4b0] sm:$0xff]
  %v1390 = vld [vmem:[%s1238 + $0x4b8] sm:$0xff]
  %v1391 = vld [vmem:[%s1238 + $0x4c0] sm:$0xff]
  %v1392 = vld [vmem:[%s1238 + $0x4c8] sm:$0xff]
  %v1393 = vld [vmem:[%s1238 + $0x4d0] sm:$0xff]
  %v1394 = vld [vmem:[%s1238 + $0x4d8] sm:$0xff]
  %v1395 = vld [vmem:[%s1238 + $0x4e0] sm:$0xff]
  %v1396 = vld [vmem:[%s1238 + $0x4e8] sm:$0xff]
  %v1397 = vld [vmem:[%s1238 + $0x4f0] sm:$0xff]
  %v1398 = vld [vmem:[%s1238 + $0x4f8] sm:$0xff]
  %v1399 = vld [vmem:[%s1238 + $0x500] sm:$0xff]
  %v1400 = vld [vmem:[%s1238 + $0x508] sm:$0xff]
  %v1401 = vld [vmem:[%s1238 + $0x510] sm:$0xff]
  %v1402 = vld [vmem:[%s1238 + $0x518] sm:$0xff]
  %v1403 = vld [vmem:[%s1238 + $0x520] sm:$0xff]
  %v1404 = vld [vmem:[%s1238 + $0x528] sm:$0xff]
  %v1405 = vld [vmem:[%s1238 + $0x530] sm:$0xff]
  %v1406 = vld [vmem:[%s1238 + $0x538] sm:$0xff]
  %v1407 = vld [vmem:[%s1238 + $0x540] sm:$0xff]
  %v1408 = vld [vmem:[%s1238 + $0x548] sm:$0xff]
  %v1409 = vld [vmem:[%s1238 + $0x550] sm:$0xff]
  %v1410 = vld [vmem:[%s1238 + $0x558] sm:$0xff]
  %v1411 = vld [vmem:[%s1238 + $0x560] sm:$0xff]
  %v1412 = vld [vmem:[%s1238 + $0x568] sm:$0xff]
  %v1413 = vld [vmem:[%s1238 + $0x570] sm:$0xff]
  %v1414 = vld [vmem:[%s1238 + $0x578] sm:$0xff]
  %v1415 = vld [vmem:[%s1238 + $0x580] sm:$0xff]
  %v1416 = vld [vmem:[%s1238 + $0x588] sm:$0xff]
  %v1417 = vld [vmem:[%s1238 + $0x590] sm:$0xff]
  %v1418 = vld [vmem:[%s1238 + $0x598] sm:$0xff]
  %v1419 = vld [vmem:[%s1238 + $0x5a0] sm:$0xff]
  %v1420 = vld [vmem:[%s1238 + $0x5a8] sm:$0xff]
  %v1421 = vld [vmem:[%s1238 + $0x5b0] sm:$0xff]
  %v1422 = vld [vmem:[%s1238 + $0x5b8] sm:$0xff]
  %v1423 = vld [vmem:[%s1238 + $0x5c0] sm:$0xff]
  %v1424 = vld [vmem:[%s1238 + $0x5c8] sm:$0xff]
  %v1425 = vld [vmem:[%s1238 + $0x5d0] sm:$0xff]
  %v1426 = vld [vmem:[%s1238 + $0x5d8] sm:$0xff]
  %v1427 = vld [vmem:[%s1238 + $0x5e0] sm:$0xff]
  %v1428 = vld [vmem:[%s1238 + $0x5e8] sm:$0xff]
  %v1429 = vld [vmem:[%s1238 + $0x5f0] sm:$0xff]
  %v1430 = vld [vmem:[%s1238 + $0x5f8] sm:$0xff]
  %s1431 = scalar_lea.vmem %s5, 2
  %v1432 = vld [vmem:[%s1431] ss:$8 sm:$0x7]
  %v1434 = vlaneseq
  %v1435 = vshrl.u32 %v1434, 7
  %v1436 = vsub.s32 0, %v1435
  %v1437 = vrot.slane %v1432, %v1436
  %v1438 = vlaneseq
  %v1439 = vshrl.u32 %v1438, 7
  %v1440 = vsub.s32 1, %v1439
  %v1441 = vrot.slane %v1432, %v1440
  %v1442 = vlaneseq
  %v1443 = vshrl.u32 %v1442, 7
  %v1444 = vsub.s32 2, %v1443
  %v1445 = vrot.slane %v1432, %v1444
  %1449 = vmatprep.subr.mxu0 %v1285
  %1450 = vmatpush1.msra.mxu0 %v1284
  %1451 = vmatprep.subr.mxu0 %v1282
  %1452 = vmatpush1.msra.mxu0 %v1281
  %1453 = vmatprep.subr.mxu0 %v1279
  %1454 = vmatpush1.msra.mxu0 %v1278
  %1455 = vmatprep.subr.mxu0 %v1276
  %1456 = vmatpush1.msra.mxu0 %v1275
  %1457 = vmatprep.subr.mxu0 %v1273
  %1458 = vmatpush1.msra.mxu0 %v1272
  %1459 = vmatprep.subr.mxu0 %v1270
  %1460 = vmatpush1.msra.mxu0 %v1269
  %1461 = vmatprep.subr.mxu0 %v1267
  %1462 = vmatpush1.msra.mxu0 %v1266
  %1463 = vmatprep.subr.mxu0 %v1264
  %1464 = vmatpush1.msra.mxu0 %v1263
  %1465 = vmatprep.subr.mxu0 %v1261
  %1466 = vmatpush1.msra.mxu0 %v1260
  %1467 = vmatprep.subr.mxu0 %v1258
  %1468 = vmatpush1.msra.mxu0 %v1257
  %1469 = vmatprep.subr.mxu0 %v1255
  %1470 = vmatpush1.msra.mxu0 %v1254
  %1471 = vmatprep.subr.mxu0 %v1252
  %1472 = vmatpush1.msra.mxu0 %v1251
  %1473 = vmatprep.subr.mxu0 %v1249
  %1474 = vmatpush1.msra.mxu0 %v1248
  %1475 = vmatprep.subr.mxu0 %v1246
  %1476 = vmatpush1.msra.mxu0 %v1245
  %1477 = vmatprep.subr.mxu0 %v1243
  %1478 = vmatpush1.msra.mxu0 %v1242
  %1479 = vmatprep.subr.mxu0 %v1240
  %1480 = vmatpush1.msra.mxu0 %v1239
  %1481 = vmatprep.subr.mxu0 %v1333
  %1482 = vmatpush2.msra.mxu0 %v1332
  %1483 = vmatprep.subr.mxu0 %v1330
  %1484 = vmatpush2.msra.mxu0 %v1329
  %1485 = vmatprep.subr.mxu0 %v1327
  %1486 = vmatpush2.msra.mxu0 %v1326
  %1487 = vmatprep.subr.mxu0 %v1324
  %1488 = vmatpush2.msra.mxu0 %v1323
  %1489 = vmatprep.subr.mxu0 %v1321
  %1490 = vmatpush2.msra.mxu0 %v1320
  %1491 = vmatprep.subr.mxu0 %v1318
  %1492 = vmatpush2.msra.mxu0 %v1317
  %1493 = vmatprep.subr.mxu0 %v1315
  %1494 = vmatpush2.msra.mxu0 %v1314
  %1495 = vmatprep.subr.mxu0 %v1312
  %1496 = vmatpush2.msra.mxu0 %v1311
  %1497 = vmatprep.subr.mxu0 %v1309
  %1498 = vmatpush2.msra.mxu0 %v1308
  %1499 = vmatprep.subr.mxu0 %v1306
  %1500 = vmatpush2.msra.mxu0 %v1305
  %1501 = vmatprep.subr.mxu0 %v1303
  %1502 = vmatpush2.msra.mxu0 %v1302
  %1503 = vmatprep.subr.mxu0 %v1300
  %1504 = vmatpush2.msra.mxu0 %v1299
  %1505 = vmatprep.subr.mxu0 %v1297
  %1506 = vmatpush2.msra.mxu0 %v1296
  %1507 = vmatprep.subr.mxu0 %v1294
  %1508 = vmatpush2.msra.mxu0 %v1293
  %1509 = vmatprep.subr.mxu0 %v1291
  %1510 = vmatpush2.msra.mxu0 %v1290
  %1511 = vmatprep.subr.mxu0 %v1288
  %1512 = vmatpush2.msra.mxu0 %v1287
  %1513 = vmatprep.mubr.f32.mxu0 %v740
  %1514 = vmatmul.mubr.f32.gmra.mxu0 %v739
  %v1515 = vpop.f32.mrf.mxu0
  %v1516 = vadd.f32 %v1437, %v1515
  %v1517 = vpop.f32.mrf.mxu0
  %v1518 = vadd.f32 %v1441, %v1517
  %1519 = vdwg.mxu0
  %1520 = vmatprep.subr.mxu0 %v1381
  %1521 = vmatpush1.msra.mxu0 %v1380
  %1522 = vmatprep.subr.mxu0 %v1378
  %1523 = vmatpush1.msra.mxu0 %v1377
  %1524 = vmatprep.subr.mxu0 %v1375
  %1525 = vmatpush1.msra.mxu0 %v1374
  %1526 = vmatprep.subr.mxu0 %v1372
  %1527 = vmatpush1.msra.mxu0 %v1371
  %1528 = vmatprep.subr.mxu0 %v1369
  %1529 = vmatpush1.msra.mxu0 %v1368
  %1530 = vmatprep.subr.mxu0 %v1366
  %1531 = vmatpush1.msra.mxu0 %v1365
  %1532 = vmatprep.subr.mxu0 %v1363
  %1533 = vmatpush1.msra.mxu0 %v1362
  %1534 = vmatprep.subr.mxu0 %v1360
  %1535 = vmatpush1.msra.mxu0 %v1359
  %1536 = vmatprep.subr.mxu0 %v1357
  %1537 = vmatpush1.msra.mxu0 %v1356
  %1538 = vmatprep.subr.mxu0 %v1354
  %1539 = vmatpush1.msra.mxu0 %v1353
  %1540 = vmatprep.subr.mxu0 %v1351
  %1541 = vmatpush1.msra.mxu0 %v1350
  %1542 = vmatprep.subr.mxu0 %v1348
  %1543 = vmatpush1.msra.mxu0 %v1347
  %1544 = vmatprep.subr.mxu0 %v1345
  %1545 = vmatpush1.msra.mxu0 %v1344
  %1546 = vmatprep.subr.mxu0 %v1342
  %1547 = vmatpush1.msra.mxu0 %v1341
  %1548 = vmatprep.subr.mxu0 %v1339
  %1549 = vmatpush1.msra.mxu0 %v1338
  %1550 = vmatprep.subr.mxu0 %v1336
  %1551 = vmatpush1.msra.mxu0 %v1335
  %1552 = vmatprep.subr.mxu0 %v1429
  %1553 = vmatpush2.msra.mxu0 %v1428
  %1554 = vmatprep.subr.mxu0 %v1426
  %1555 = vmatpush2.msra.mxu0 %v1425
  %1556 = vmatprep.subr.mxu0 %v1423
  %1557 = vmatpush2.msra.mxu0 %v1422
  %1558 = vmatprep.subr.mxu0 %v1420
  %1559 = vmatpush2.msra.mxu0 %v1419
  %1560 = vmatprep.subr.mxu0 %v1417
  %1561 = vmatpush2.msra.mxu0 %v1416
  %1562 = vmatprep.subr.mxu0 %v1414
  %1563 = vmatpush2.msra.mxu0 %v1413
  %1564 = vmatprep.subr.mxu0 %v1411
  %1565 = vmatpush2.msra.mxu0 %v1410
  %1566 = vmatprep.subr.mxu0 %v1408
  %1567 = vmatpush2.msra.mxu0 %v1407
  %1568 = vmatprep.subr.mxu0 %v1405
  %1569 = vmatpush2.msra.mxu0 %v1404
  %1570 = vmatprep.subr.mxu0 %v1402
  %1571 = vmatpush2.msra.mxu0 %v1401
  %1572 = vmatprep.subr.mxu0 %v1399
  %1573 = vmatpush2.msra.mxu0 %v1398
  %1574 = vmatprep.subr.mxu0 %v1396
  %1575 = vmatpush2.msra.mxu0 %v1395
  %1576 = vmatprep.subr.mxu0 %v1393
  %1577 = vmatpush2.msra.mxu0 %v1392
  %1578 = vmatprep.subr.mxu0 %v1390
  %1579 = vmatpush2.msra.mxu0 %v1389
  %1580 = vmatprep.subr.mxu0 %v1387
  %1581 = vmatpush2.msra.mxu0 %v1386
  %1582 = vmatprep.subr.mxu0 %v1384
  %1583 = vmatpush2.msra.mxu0 %v1383
  %1584 = vmatprep.mubr.f32.mxu0 %v742
  %1585 = vmatmul.mubr.f32.gmra.mxu0 %v741
  %v1586 = vpop.f32.mrf.mxu0
  %v1587 = vadd.f32 %v1516, %v1586
  %v1588 = vpop.f32.mrf.mxu0
  %v1589 = vadd.f32 %v1518, %v1588
  %1590 = vdwg.mxu0
  %1591 = vmatprep.subr.mxu0 0.0
  %1592 = vmatpush1.msra.mxu0 %v1286
  %1593 = vmatprep.subr.mxu0 0.0
  %1594 = vmatpush1.msra.mxu0 %v1283
  %1595 = vmatprep.subr.mxu0 0.0
  %1596 = vmatpush1.msra.mxu0 %v1280
  %1597 = vmatprep.subr.mxu0 0.0
  %1598 = vmatpush1.msra.mxu0 %v1277
  %1599 = vmatprep.subr.mxu0 0.0
  %1600 = vmatpush1.msra.mxu0 %v1274
  %1601 = vmatprep.subr.mxu0 0.0
  %1602 = vmatpush1.msra.mxu0 %v1271
  %1603 = vmatprep.subr.mxu0 0.0
  %1604 = vmatpush1.msra.mxu0 %v1268
  %1605 = vmatprep.subr.mxu0 0.0
  %1606 = vmatpush1.msra.mxu0 %v1265
  %1607 = vmatprep.subr.mxu0 0.0
  %1608 = vmatpush1.msra.mxu0 %v1262
  %1609 = vmatprep.subr.mxu0 0.0
  %1610 = vmatpush1.msra.mxu0 %v1259
  %1611 = vmatprep.subr.mxu0 0.0
  %1612 = vmatpush1.msra.mxu0 %v1256
  %1613 = vmatprep.subr.mxu0 0.0
  %1614 = vmatpush1.msra.mxu0 %v1253
  %1615 = vmatprep.subr.mxu0 0.0
  %1616 = vmatpush1.msra.mxu0 %v1250
  %1617 = vmatprep.subr.mxu0 0.0
  %1618 = vmatpush1.msra.mxu0 %v1247
  %1619 = vmatprep.subr.mxu0 0.0
  %1620 = vmatpush1.msra.mxu0 %v1244
  %1621 = vmatprep.subr.mxu0 0.0
  %1622 = vmatpush1.msra.mxu0 %v1241
  %1623 = vmatprep.subr.mxu0 0.0
  %1624 = vmatpush2.msra.mxu0 %v1334
  %1625 = vmatprep.subr.mxu0 0.0
  %1626 = vmatpush2.msra.mxu0 %v1331
  %1627 = vmatprep.subr.mxu0 0.0
  %1628 = vmatpush2.msra.mxu0 %v1328
  %1629 = vmatprep.subr.mxu0 0.0
  %1630 = vmatpush2.msra.mxu0 %v1325
  %1631 = vmatprep.subr.mxu0 0.0
  %1632 = vmatpush2.msra.mxu0 %v1322
  %1633 = vmatprep.subr.mxu0 0.0
  %1634 = vmatpush2.msra.mxu0 %v1319
  %1635 = vmatprep.subr.mxu0 0.0
  %1636 = vmatpush2.msra.mxu0 %v1316
  %1637 = vmatprep.subr.mxu0 0.0
  %1638 = vmatpush2.msra.mxu0 %v1313
  %1639 = vmatprep.subr.mxu0 0.0
  %1640 = vmatpush2.msra.mxu0 %v1310
  %1641 = vmatprep.subr.mxu0 0.0
  %1642 = vmatpush2.msra.mxu0 %v1307
  %1643 = vmatprep.subr.mxu0 0.0
  %1644 = vmatpush2.msra.mxu0 %v1304
  %1645 = vmatprep.subr.mxu0 0.0
  %1646 = vmatpush2.msra.mxu0 %v1301
  %1647 = vmatprep.subr.mxu0 0.0
  %1648 = vmatpush2.msra.mxu0 %v1298
  %1649 = vmatprep.subr.mxu0 0.0
  %1650 = vmatpush2.msra.mxu0 %v1295
  %1651 = vmatprep.subr.mxu0 0.0
  %1652 = vmatpush2.msra.mxu0 %v1292
  %1653 = vmatprep.subr.mxu0 0.0
  %1654 = vmatpush2.msra.mxu0 %v1289
  %1655 = vmatprep.mubr.f32.mxu0 %v740
  %1656 = vmatmul.mubr.f32.gmra.mxu0 %v739
  %v1657 = vpop.f32.mrf.mxu0
  %v1658 = vadd.f32 %v1445, %v1657
  %v1659 = vpop.f32.mrf.mxu0
  %1660 = vdwg.mxu0
  %1661 = vmatprep.subr.mxu0 0.0
  %1662 = vmatpush1.msra.mxu0 %v1382
  %1663 = vmatprep.subr.mxu0 0.0
  %1664 = vmatpush1.msra.mxu0 %v1379
  %1665 = vmatprep.subr.mxu0 0.0
  %1666 = vmatpush1.msra.mxu0 %v1376
  %1667 = vmatprep.subr.mxu0 0.0
  %1668 = vmatpush1.msra.mxu0 %v1373
  %1669 = vmatprep.subr.mxu0 0.0
  %1670 = vmatpush1.msra.mxu0 %v1370
  %1671 = vmatprep.subr.mxu0 0.0
  %1672 = vmatpush1.msra.mxu0 %v1367
  %1673 = vmatprep.subr.mxu0 0.0
  %1674 = vmatpush1.msra.mxu0 %v1364
  %1675 = vmatprep.subr.mxu0 0.0
  %1676 = vmatpush1.msra.mxu0 %v1361
  %1677 = vmatprep.subr.mxu0 0.0
  %1678 = vmatpush1.msra.mxu0 %v1358
  %1679 = vmatprep.subr.mxu0 0.0
  %1680 = vmatpush1.msra.mxu0 %v1355
  %1681 = vmatprep.subr.mxu0 0.0
  %1682 = vmatpush1.msra.mxu0 %v1352
  %1683 = vmatprep.subr.mxu0 0.0
  %1684 = vmatpush1.msra.mxu0 %v1349
  %1685 = vmatprep.subr.mxu0 0.0
  %1686 = vmatpush1.msra.mxu0 %v1346
  %1687 = vmatprep.subr.mxu0 0.0
  %1688 = vmatpush1.msra.mxu0 %v1343
  %1689 = vmatprep.subr.mxu0 0.0
  %1690 = vmatpush1.msra.mxu0 %v1340
  %1691 = vmatprep.subr.mxu0 0.0
  %1692 = vmatpush1.msra.mxu0 %v1337
  %1693 = vmatprep.subr.mxu0 0.0
  %1694 = vmatpush2.msra.mxu0 %v1430
  %1695 = vmatprep.subr.mxu0 0.0
  %1696 = vmatpush2.msra.mxu0 %v1427
  %1697 = vmatprep.subr.mxu0 0.0
  %1698 = vmatpush2.msra.mxu0 %v1424
  %1699 = vmatprep.subr.mxu0 0.0
  %1700 = vmatpush2.msra.mxu0 %v1421
  %1701 = vmatprep.subr.mxu0 0.0
  %1702 = vmatpush2.msra.mxu0 %v1418
  %1703 = vmatprep.subr.mxu0 0.0
  %1704 = vmatpush2.msra.mxu0 %v1415
  %1705 = vmatprep.subr.mxu0 0.0
  %1706 = vmatpush2.msra.mxu0 %v1412
  %1707 = vmatprep.subr.mxu0 0.0
  %1708 = vmatpush2.msra.mxu0 %v1409
  %1709 = vmatprep.subr.mxu0 0.0
  %1710 = vmatpush2.msra.mxu0 %v1406
  %1711 = vmatprep.subr.mxu0 0.0
  %1712 = vmatpush2.msra.mxu0 %v1403
  %1713 = vmatprep.subr.mxu0 0.0
  %1714 = vmatpush2.msra.mxu0 %v1400
  %1715 = vmatprep.subr.mxu0 0.0
  %1716 = vmatpush2.msra.mxu0 %v1397
  %1717 = vmatprep.subr.mxu0 0.0
  %1718 = vmatpush2.msra.mxu0 %v1394
  %1719 = vmatprep.subr.mxu0 0.0
  %1720 = vmatpush2.msra.mxu0 %v1391
  %1721 = vmatprep.subr.mxu0 0.0
  %1722 = vmatpush2.msra.mxu0 %v1388
  %1723 = vmatprep.subr.mxu0 0.0
  %1724 = vmatpush2.msra.mxu0 %v1385
  %1725 = vmatprep.mubr.f32.mxu0 %v742
  %1726 = vmatmul.mubr.f32.gmra.mxu0 %v741
  %v1727 = vpop.f32.mrf.mxu0
  %v1728 = vadd.f32 %v1658, %v1727
  %v1729 = vpop.f32.mrf.mxu0
  %1730 = vdwg.mxu0
  %v1731 = vmax.f32 %v1587, 0.0
  %v1732 = vmax.f32 %v1589, 0.0
  %v1733 = vmax.f32 %v1728, 0.0
  %s1734 = scalar_lea.vmem %s5, 3
  %v1735 = vld [vmem:[%s1734] ss:$8 sm:$0x7]
  %v1737 = vlaneseq
  %v1738 = vshrl.u32 %v1737, 7
  %v1739 = vsub.s32 0, %v1738
  %v1740 = vrot.slane %v1735, %v1739
  %v1741 = vlaneseq
  %v1742 = vshrl.u32 %v1741, 7
  %v1743 = vsub.s32 1, %v1742
  %v1744 = vrot.slane %v1735, %v1743
  %v1745 = vlaneseq
  %v1746 = vshrl.u32 %v1745, 7
  %v1747 = vsub.s32 2, %v1746
  %v1748 = vrot.slane %v1735, %v1747
  %v1752 = vmul.f32 %v1235, %v1740
  %v1753 = vmul.f32 %v1236, %v1744
  %v1754 = vmul.f32 %v1237, %v1748
  %v1755 = vadd.f32 %v1752, %v1753
  %vm1756 = vcmask 359424
  %v1757 = vsel %vm1756, %v1754, 0.0
  %v1758 = vadd.f32 %v1755, %v1757
  %1759 = vadd.xlane.f32.xlu0 %v1758
  %v1760 = vpop.xlane.xlu0 %1759
  %v1761 = vld [vmem:[%s5 + $0x5] ss:$0 sm:$0xff]
  %v1762 = vadd.f32 %v1760, %v1761
  %s1763 = scalar_lea.vmem %s5, 4
  %v1764 = vld [vmem:[%s1763] ss:$8 sm:$0x7]
  %v1766 = vlaneseq
  %v1767 = vshrl.u32 %v1766, 7
  %v1768 = vsub.s32 0, %v1767
  %v1769 = vrot.slane %v1764, %v1768
  %v1770 = vlaneseq
  %v1771 = vshrl.u32 %v1770, 7
  %v1772 = vsub.s32 1, %v1771
  %v1773 = vrot.slane %v1764, %v1772
  %v1774 = vlaneseq
  %v1775 = vshrl.u32 %v1774, 7
  %v1776 = vsub.s32 2, %v1775
  %v1777 = vrot.slane %v1764, %v1776
  %v1781 = vmul.f32 %v1731, %v1769
  %v1782 = vmul.f32 %v1732, %v1773
  %v1783 = vmul.f32 %v1733, %v1777
  %v1784 = vadd.f32 %v1781, %v1782
  %v1785 = vsel %vm1756, %v1783, 0.0
  %v1786 = vadd.f32 %v1784, %v1785
  %1787 = vadd.xlane.f32.xlu0 %v1786
  %v1788 = vpop.xlane.xlu0 %1787
  %v1789 = vadd.f32 %v1788, %v1761
  %vm1790 = vcmask 7168
  %v1791 = vsel %vm1790, %v1762, %v1789
  %vm1792 = vcmask 15360
  %1793 = vst.msk [vmem:[%s6] sm:$0xff] %vm1792, %v1791
  // Predicated region
  $region26: #{tpu_custom_call.1} parent=0 // pred_check
    _
  $region27: #{tpu_custom_call.1} parent=0 // pred_check_branch
    %1795 = sbr.rel (0) target = $region29
  $region28: #{tpu_custom_call.1} parent=0 // pred_region
    _
  $region29: #{tpu_custom_call.1} parent=0 // pred_fallthru
    _
  // Predicated region
  $region30: #{tpu_custom_call.1} parent=0 // pred_check
    _
  $region31: #{tpu_custom_call.1} parent=0 // pred_check_branch
    %1797 = sbr.rel (0) target = $region33
  $region32: #{tpu_custom_call.1} parent=0 // pred_region
    _
  $region33: #{tpu_custom_call.1} parent=0 // pred_fallthru
    _

</llo_original>
